<compile_context>
chip_gen: v7x
topology: tpu7x:2x2x1
jax: 0.10.0
libtpu: 0.0.40
codegen_flags: <defaults>
</compile_context>

<pallas_src>
import jax
import jax.numpy as jnp
from jax.experimental import pallas as pl
from jax.experimental.pallas import tpu as pltpu

LN_EPS = 1e-5  # nn.LayerNorm default


def critic_kernel(obs_ref, act_ref,
                  wt_ref, bt_ref, g_ref, beta_ref,
                  wa_h_ref, wa_a_ref, ba_ref,
                  w1b_ref, b1b_ref, w2b_ref, b2b_ref,
                  w1c_ref, b1c_ref, w2c_ref, b2c_ref,
                  q_ref, acc_ref):
    k = pl.program_id(1)

    @pl.when(k == 0)
    def _():
        acc_ref[...] = jnp.zeros_like(acc_ref)

    # ---- trunk matmul, one K chunk per grid step; obs arrives in its producer
    #      dtype (f32 here, bf16 if the encoder emits bf16) and is cast to bf16
    #      right before the MXU dot -- no extra wrapper-side HBM pass. ----
    acc_ref[...] += jnp.dot(obs_ref[...].astype(jnp.bfloat16), wt_ref[...],
                            preferred_element_type=jnp.float32)

    @pl.when(k == pl.num_programs(1) - 1)
    def _():
        # ---- trunk epilogue: bias -> LayerNorm -> Tanh (stats in f32) ----
        h = acc_ref[...] + bt_ref[...]
        mu = jnp.mean(h, axis=-1, keepdims=True)
        var = jnp.mean(jnp.square(h - mu), axis=-1, keepdims=True)
        h = (h - mu) * jax.lax.rsqrt(var + LN_EPS)
        h = jnp.tanh(h * g_ref[...] + beta_ref[...])

        # ---- both Q heads, layer a (fused): cat([h, a]) @ W == h@W_h + a@W_a,
        #      with the two heads' weights concatenated along the output axis ----
        act = act_ref[...].astype(jnp.bfloat16)
        x = (jnp.dot(h.astype(jnp.bfloat16), wa_h_ref[...],
                     preferred_element_type=jnp.float32)
             + jnp.dot(act, wa_a_ref[...], preferred_element_type=jnp.float32)
             + ba_ref[...])
        x = jnp.maximum(x, 0.0)                                   # ReLU
        hid = w1b_ref.shape[0]
        # NOTE: keep hidden_dim a multiple of 128 at deployment sizes (DrQ-v2's
        # 1024 is) so this split stays lane-aligned.
        x1 = x[:, :hid].astype(jnp.bfloat16)
        x2 = x[:, hid:].astype(jnp.bfloat16)

        # ---- layer b per head ----
        y1 = jnp.maximum(jnp.dot(x1, w1b_ref[...],
                                 preferred_element_type=jnp.float32) + b1b_ref[...], 0.0)
        y2 = jnp.maximum(jnp.dot(x2, w2b_ref[...],
                                 preferred_element_type=jnp.float32) + b2b_ref[...], 0.0)

        # ---- final (hidden -> 1) per head on VPU+XLU; direct column stores
        #      instead of a cross-lane concatenate ----
        q_ref[:, 0:1] = jnp.sum(y1 * w1c_ref[...], axis=-1, keepdims=True) + b1c_ref[...]
        q_ref[:, 1:2] = jnp.sum(y2 * w2c_ref[...], axis=-1, keepdims=True) + b2c_ref[...]


# --------------------------------------------------------------------------- #
# Wrapper
# --------------------------------------------------------------------------- #

def _tpu_vmem_capacity_bytes():
    try:
        return int(pltpu.get_tpu_info().vmem_capacity_bytes)
    except Exception:
        return 64 * 1024 * 1024  # conservative default (v7x-class per-core VMEM)


def _pick_tile_b(batch, cap, want_two_steps):
    """Largest divisor of batch <= cap that is sublane-aligned (mult of 8) or == batch."""
    def best_divisor(limit):
        best = None
        for d in range(1, batch + 1):
            if batch % d == 0 and d <= limit and (d % 8 == 0 or d == batch):
                best = d
        return best

    tile = best_divisor(cap) or batch
    if want_two_steps and tile == batch and batch > 1:
        smaller = best_divisor(batch // 2)
        if smaller is not None:
            tile = smaller   # >= 2 batch grid steps so both v7x TensorCores get work
    return tile


def _pick_tile_k(repr_dim, cap=8192):
    """Largest 128-multiple divisor of repr_dim <= cap (obs last-dim constraint)."""
    if repr_dim <= cap:
        return repr_dim
    best = None
    for d in range(128, cap + 1, 128):
        if repr_dim % d == 0:
            best = d
    if best is None:
        # TODO(synk): pad repr_dim (e.g. DrQ-v2's 39200) to a 128-multiple in the
        # encoder so the trunk can be K-streamed; fall back to one K block.
        return repr_dim
    return best


def critic_forward(obs, action, params, *, tile_b=None, tile_k=None):
    B, repr_dim = obs.shape
    action_dim = action.shape[1]
    feature_dim = params[0].shape[1]
    hidden_dim = params[7].shape[0]

    vmem_cap = _tpu_vmem_capacity_bytes()
    small_vmem = vmem_cap <= 64 * 1024 * 1024            # v7x: 64 MiB/TC, 2 TCs
    vmem_limit = (48 if small_vmem else 96) * 1024 * 1024

    if tile_k is None:
        tile_k = _pick_tile_k(repr_dim)
    if tile_b is None:
        tile_b = _pick_tile_b(B, cap=128 if small_vmem else 256,
                              want_two_steps=small_vmem)
        # Keep the double-buffered obs window within ~half the VMEM budget.
        while tile_b > 8:
            if 2 * tile_b * tile_k * obs.dtype.itemsize <= vmem_limit // 2:
                break
            smaller = _pick_tile_b(B, cap=tile_b // 2, want_two_steps=False)
            if smaller >= tile_b:
                break
            tile_b = smaller

    assert B % tile_b == 0, "tile_b must divide the batch (no wrapper-side padding)"
    assert repr_dim % tile_k == 0, "tile_k must divide repr_dim"
    grid = (B // tile_b, repr_dim // tile_k)

    cost = pl.CostEstimate(
        flops=int(2 * B * (repr_dim * feature_dim
                           + (feature_dim + action_dim) * 2 * hidden_dim
                           + 2 * hidden_dim * hidden_dim
                           + 2 * hidden_dim)),
        transcendentals=int(B * feature_dim),
        bytes_accessed=int(obs.size * obs.dtype.itemsize
                           + action.size * action.dtype.itemsize
                           + sum(int(p.size) * p.dtype.itemsize for p in params)
                           + B * 2 * 4))

    def block(shape, index_map, mode=None):
        if mode is None:
            return pl.BlockSpec(shape, index_map)
        return pl.BlockSpec(shape, index_map, pipeline_mode=mode)

    def build(use_pipeline_modes):
        obs_mode = pl.Buffered(3) if (use_pipeline_modes and grid[1] > 2) else None
        w_mode = pl.Buffered(1) if use_pipeline_modes else None
        in_specs = (
            [block((tile_b, tile_k), lambda i, k: (i, k), obs_mode),      # obs (streamed)
             block((tile_b, action_dim), lambda i, k: (i, 0)),            # action
             block((tile_k, feature_dim), lambda i, k: (k, 0))]           # trunk weight (streamed)
            # remaining weights / biases stay VMEM-resident (constant index map)
            + [block(p.shape, lambda i, k: (0, 0), w_mode) for p in params[1:]])
        return pl.pallas_call(
            critic_kernel,
            out_shape=jax.ShapeDtypeStruct((B, 2), jnp.float32),
            grid=grid,
            in_specs=in_specs,
            out_specs=pl.BlockSpec((tile_b, 2), lambda i, k: (i, 0)),
            scratch_shapes=[pltpu.VMEM((tile_b, feature_dim), jnp.float32)],
            compiler_params=pltpu.CompilerParams(
                dimension_semantics=("parallel", "arbitrary"),
                vmem_limit_bytes=vmem_limit),
            cost_estimate=cost)

    try:
        q = build(True)(obs, action, *params)
    except Exception:
        # pipeline_mode=pl.Buffered(...) unsupported on this JAX version:
        # fall back to default (double) buffering everywhere.
        q = build(False)(obs, action, *params)

    return q[:, 0:1], q[:, 1:2]


# --------------------------------------------------------------------------- #
# Parameters / reference
# --------------------------------------------------------------------------- #

def make_params(key, repr_dim, action_dim, feature_dim, hidden_dim):
    """Deterministic synthetic parameters, pre-transposed / pre-fused for the kernel."""
    ks = iter(jax.random.split(key, 16))

    def lin_w(fan_in, fan_out):
        return jax.random.normal(next(ks), (fan_in, fan_out), jnp.float32) / jnp.sqrt(fan_in)

    def lin_b(dim):
        return 0.1 * jax.random.normal(next(ks), (1, dim), jnp.float32)

    wt, bt = lin_w(repr_dim, feature_dim), lin_b(feature_dim)
    gamma = jnp.ones((1, feature_dim), jnp.float32)
    beta = jnp.zeros((1, feature_dim), jnp.float32)

    # Q-head layer a: (feature_dim + action_dim) -> hidden, both heads.
    wa1 = lin_w(feature_dim + action_dim, hidden_dim)
    wa2 = lin_w(feature_dim + action_dim, hidden_dim)
    wa_h = jnp.concatenate([wa1[:feature_dim], wa2[:feature_dim]], axis=1)   # (F, 2H)
    wa_a = jnp.concatenate([wa1[feature_dim:], wa2[feature_dim:]], axis=1)   # (A, 2H)
    ba = jnp.concatenate([lin_b(hidden_dim), lin_b(hidden_dim)], axis=1)     # (1, 2H)

    w1b, b1b = lin_w(hidden_dim, hidden_dim), lin_b(hidden_dim)
    w2b, b2b = lin_w(hidden_dim, hidden_dim), lin_b(hidden_dim)

    # Final (hidden -> 1) weights stored as (1, hidden) rows (VPU mul + lane-sum).
    w1c, b1c = lin_w(hidden_dim, 1).T, lin_b(1)
    w2c, b2c = lin_w(hidden_dim, 1).T, lin_b(1)

    bf16 = lambda a: a.astype(jnp.bfloat16)
    return (bf16(wt), bt, gamma, beta,
            bf16(wa_h), bf16(wa_a), ba,
            bf16(w1b), b1b, bf16(w2b), b2b,
            w1c, b1c, w2c, b2c)


def critic_reference(obs, action, params):
    """Pure-JAX f32 reference (HIGHEST precision matmuls, bf16-rounded inputs/weights)."""
    (wt, bt, g, beta,
     wa_h, wa_a, ba,
     w1b, b1b, w2b, b2b,
     w1c, b1c, w2c, b2c) = params
    f32 = lambda a: a.astype(jnp.float32)
    hi = jax.lax.Precision.HIGHEST
    # Match the kernel's in-kernel bf16 rounding of the MXU inputs.
    obs = obs.astype(jnp.bfloat16).astype(jnp.float32)
    action = action.astype(jnp.bfloat16).astype(jnp.float32)

    h = jnp.dot(obs, f32(wt), precision=hi) + bt
    mu = h.mean(-1, keepdims=True)
    var = ((h - mu) ** 2).mean(-1, keepdims=True)
    h = jnp.tanh((h - mu) / jnp.sqrt(var + LN_EPS) * g + beta)

    x = jnp.maximum(jnp.dot(h, f32(wa_h), precision=hi)
                    + jnp.dot(action, f32(wa_a), precision=hi) + ba, 0.0)
    hid = w1b.shape[0]
    x1, x2 = x[:, :hid], x[:, hid:]
    y1 = jnp.maximum(jnp.dot(x1, f32(w1b), precision=hi) + b1b, 0.0)
    y2 = jnp.maximum(jnp.dot(x2, f32(w2b), precision=hi) + b2b, 0.0)
    q1 = (y1 * w1c).sum(-1, keepdims=True) + b1c
    q2 = (y2 * w2c).sum(-1, keepdims=True) + b2c
    return q1, q2


if __name__ == "__main__":
    key = jax.random.PRNGKey(0)

    def run_case(B, repr_dim, action_dim, feature_dim, hidden_dim, tol, **tiles):
        k_obs, k_act, k_par = jax.random.split(jax.random.fold_in(key, B), 3)
        obs = jax.random.normal(k_obs, (B, repr_dim), jnp.float32)
        action = jax.random.uniform(k_act, (B, action_dim), jnp.float32,
                                    minval=-1.0, maxval=1.0)
        params = make_params(k_par, repr_dim, action_dim, feature_dim, hidden_dim)

        q1, q2 = critic_forward(obs, action, params, **tiles)
        jax.block_until_ready((q1, q2))

        q1_ref, q2_ref = critic_reference(obs, action, params)
        assert q1.shape == (B, 1) and q2.shape == (B, 1)
        assert jnp.allclose(q1, q1_ref, atol=tol, rtol=tol), \
            float(jnp.max(jnp.abs(q1 - q1_ref)))
        assert jnp.allclose(q2, q2_ref, atol=tol, rtol=tol), \
            float(jnp.max(jnp.abs(q2 - q2_ref)))

    # Small shapes consistent with the module (single-step grid).
    run_case(B=8, repr_dim=32, action_dim=4, feature_dim=16, hidden_dim=32, tol=2e-2)
    # Multi-step grid in both axes (batch tiling + trunk K-streaming with the f32
    # accumulator, lane-aligned Q-head split at 128).
    run_case(B=256, repr_dim=1024, action_dim=8, feature_dim=64, hidden_dim=128,
             tol=5e-2, tile_b=64, tile_k=256)

    print("KERNEL_OK")
</pallas_src>

<mosaic_0001>
module attributes {stable_mosaic.version = 11 : i64} {
  func.func @critic_kernel(%arg0: i32, %arg1: i32, %arg2: memref<8x32xf32, #tpu.memory_space<vmem>>, %arg3: memref<8x4xf32, #tpu.memory_space<vmem>>, %arg4: memref<32x16xbf16, #tpu.memory_space<vmem>>, %arg5: memref<1x16xf32, #tpu.memory_space<vmem>>, %arg6: memref<1x16xf32, #tpu.memory_space<vmem>>, %arg7: memref<1x16xf32, #tpu.memory_space<vmem>>, %arg8: memref<16x64xbf16, #tpu.memory_space<vmem>>, %arg9: memref<4x64xbf16, #tpu.memory_space<vmem>>, %arg10: memref<1x64xf32, #tpu.memory_space<vmem>>, %arg11: memref<32x32xbf16, #tpu.memory_space<vmem>>, %arg12: memref<1x32xf32, #tpu.memory_space<vmem>>, %arg13: memref<32x32xbf16, #tpu.memory_space<vmem>>, %arg14: memref<1x32xf32, #tpu.memory_space<vmem>>, %arg15: memref<1x32xf32, #tpu.memory_space<vmem>>, %arg16: memref<1x1xf32, #tpu.memory_space<vmem>>, %arg17: memref<1x32xf32, #tpu.memory_space<vmem>>, %arg18: memref<1x1xf32, #tpu.memory_space<vmem>>, %arg19: memref<8x2xf32, #tpu.memory_space<vmem>>, %arg20: memref<8x16xf32, #tpu.memory_space<vmem>>) attributes {dimension_semantics = [#tpu.dimension_semantics<parallel>, #tpu.dimension_semantics<arbitrary>], iteration_bounds = array<i64: 1, 1>, scalar_prefetch = 0 : i64, scratch_operands = 1 : i64, tpu.core_type = #tpu.core_type<tc>, window_params = [{transform_indices = @transform_0, window_bounds = array<i64: 8, 32>}, {transform_indices = @transform_1, window_bounds = array<i64: 8, 4>}, {transform_indices = @transform_2, window_bounds = array<i64: 32, 16>}, {pipeline_mode = #tpu.pipeline_mode<synchronous>, transform_indices = @transform_3, window_bounds = array<i64: 1, 16>}, {pipeline_mode = #tpu.pipeline_mode<synchronous>, transform_indices = @transform_4, window_bounds = array<i64: 1, 16>}, {pipeline_mode = #tpu.pipeline_mode<synchronous>, transform_indices = @transform_5, window_bounds = array<i64: 1, 16>}, {pipeline_mode = #tpu.pipeline_mode<synchronous>, transform_indices = @transform_6, window_bounds = array<i64: 16, 64>}, {pipeline_mode = #tpu.pipeline_mode<synchronous>, transform_indices = @transform_7, window_bounds = array<i64: 4, 64>}, {pipeline_mode = #tpu.pipeline_mode<synchronous>, transform_indices = @transform_8, window_bounds = array<i64: 1, 64>}, {pipeline_mode = #tpu.pipeline_mode<synchronous>, transform_indices = @transform_9, window_bounds = array<i64: 32, 32>}, {pipeline_mode = #tpu.pipeline_mode<synchronous>, transform_indices = @transform_10, window_bounds = array<i64: 1, 32>}, {pipeline_mode = #tpu.pipeline_mode<synchronous>, transform_indices = @transform_11, window_bounds = array<i64: 32, 32>}, {pipeline_mode = #tpu.pipeline_mode<synchronous>, transform_indices = @transform_12, window_bounds = array<i64: 1, 32>}, {pipeline_mode = #tpu.pipeline_mode<synchronous>, transform_indices = @transform_13, window_bounds = array<i64: 1, 32>}, {pipeline_mode = #tpu.pipeline_mode<synchronous>, transform_indices = @transform_14, window_bounds = array<i64: 1, 1>}, {pipeline_mode = #tpu.pipeline_mode<synchronous>, transform_indices = @transform_15, window_bounds = array<i64: 1, 32>}, {pipeline_mode = #tpu.pipeline_mode<synchronous>, transform_indices = @transform_16, window_bounds = array<i64: 1, 1>}, {transform_indices = @transform_17, window_bounds = array<i64: 8, 2>}]} {
    %c0_i32 = arith.constant 0 : i32
    %0 = arith.cmpi eq, %arg1, %c0_i32 : i32
    %1 = arith.extui %0 : i1 to i32
    %c0_i32_0 = arith.constant 0 : i32
    %2 = arith.cmpi ne, %1, %c0_i32_0 : i32
    scf.if %2 {
      %cst_10 = arith.constant 0.000000e+00 : f32
      %13 = vector.broadcast %cst_10 : f32 to vector<8x16xf32>
      %c0_11 = arith.constant 0 : index
      %c0_12 = arith.constant 0 : index
      %14 = vector.load %arg20[%c0_11, %c0_12] : memref<8x16xf32, #tpu.memory_space<vmem>>, vector<8x16xf32>
      tpu.vector_store %arg20[%c0_11, %c0_12], %13 {strides = array<i32>} : memref<8x16xf32, #tpu.memory_space<vmem>>, vector<8x16xf32>,
    } else {
    }
    %c0 = arith.constant 0 : index
    %c0_1 = arith.constant 0 : index
    %3 = vector.load %arg20[%c0, %c0_1] : memref<8x16xf32, #tpu.memory_space<vmem>>, vector<8x16xf32>
    %c0_2 = arith.constant 0 : index
    %c0_3 = arith.constant 0 : index
    %4 = vector.load %arg2[%c0_2, %c0_3] : memref<8x32xf32, #tpu.memory_space<vmem>>, vector<8x32xf32>
    %5 = arith.truncf %4 : vector<8x32xf32> to vector<8x32xbf16>
    %c0_4 = arith.constant 0 : index
    %c0_5 = arith.constant 0 : index
    %6 = vector.load %arg4[%c0_4, %c0_5] : memref<32x16xbf16, #tpu.memory_space<vmem>>, vector<32x16xbf16>
    %cst = arith.constant dense<0.000000e+00> : vector<8x16xf32>
    %7 = tpu.matmul %5, %6, %cst {dimension_numbers = #tpu.dot_dimension_numbers<[1], [0], [0], [1], [0, 0, 1, 1], [], []>} : vector<8x32xbf16>, vector<32x16xbf16>, vector<8x16xf32> -> vector<8x16xf32>
    %8 = arith.addf %3, %7 : vector<8x16xf32>
    %c0_6 = arith.constant 0 : index
    %c0_7 = arith.constant 0 : index
    %9 = vector.load %arg20[%c0_6, %c0_7] : memref<8x16xf32, #tpu.memory_space<vmem>>, vector<8x16xf32>
    tpu.vector_store %arg20[%c0_6, %c0_7], %8 {strides = array<i32>} : memref<8x16xf32, #tpu.memory_space<vmem>>, vector<8x16xf32>,
    %c0_i32_8 = arith.constant 0 : i32
    %10 = arith.cmpi eq, %arg1, %c0_i32_8 : i32
    %11 = arith.extui %10 : i1 to i32
    %c0_i32_9 = arith.constant 0 : i32
    %12 = arith.cmpi ne, %11, %c0_i32_9 : i32
    scf.if %12 {
      %c0_10 = arith.constant 0 : index
      %c0_11 = arith.constant 0 : index
      %13 = vector.load %arg20[%c0_10, %c0_11] : memref<8x16xf32, #tpu.memory_space<vmem>>, vector<8x16xf32>
      %c0_12 = arith.constant 0 : index
      %c0_13 = arith.constant 0 : index
      %14 = vector.load %arg5[%c0_12, %c0_13] : memref<1x16xf32, #tpu.memory_space<vmem>>, vector<1x16xf32>
      %15 = vector.broadcast %14 : vector<1x16xf32> to vector<8x16xf32>
      %16 = arith.addf %13, %15 : vector<8x16xf32>
      %cst_14 = arith.constant dense<0.000000e+00> : vector<8xf32>
      %17 = vector.multi_reduction <add>, %16, %cst_14 [1] : vector<8x16xf32> to vector<8xf32>
      %18 = vector.shape_cast %17 : vector<8xf32> to vector<8x1xf32>
      %cst_15 = arith.constant 1.600000e+01 : f32
      %19 = vector.broadcast %cst_15 : f32 to vector<8x1xf32>
      %20 = arith.divf %18, %19 : vector<8x1xf32>
      %21 = vector.broadcast %20 : vector<8x1xf32> to vector<8x16xf32>
      %22 = arith.subf %16, %21 : vector<8x16xf32>
      %23 = arith.mulf %22, %22 : vector<8x16xf32>
      %cst_16 = arith.constant dense<0.000000e+00> : vector<8xf32>
      %24 = vector.multi_reduction <add>, %23, %cst_16 [1] : vector<8x16xf32> to vector<8xf32>
      %25 = vector.shape_cast %24 : vector<8xf32> to vector<8x1xf32>
      %cst_17 = arith.constant 1.600000e+01 : f32
      %26 = vector.broadcast %cst_17 : f32 to vector<8x1xf32>
      %27 = arith.divf %25, %26 : vector<8x1xf32>
      %28 = vector.broadcast %20 : vector<8x1xf32> to vector<8x16xf32>
      %29 = arith.subf %16, %28 : vector<8x16xf32>
      %cst_18 = arith.constant 9.99999974E-6 : f32
      %30 = vector.broadcast %cst_18 : f32 to vector<8x1xf32>
      %31 = arith.addf %27, %30 : vector<8x1xf32>
      %32 = math.rsqrt %31 : vector<8x1xf32>
      %33 = vector.broadcast %32 : vector<8x1xf32> to vector<8x16xf32>
      %34 = arith.mulf %29, %33 : vector<8x16xf32>
      %c0_19 = arith.constant 0 : index
      %c0_20 = arith.constant 0 : index
      %35 = vector.load %arg6[%c0_19, %c0_20] : memref<1x16xf32, #tpu.memory_space<vmem>>, vector<1x16xf32>
      %36 = vector.broadcast %35 : vector<1x16xf32> to vector<8x16xf32>
      %37 = arith.mulf %34, %36 : vector<8x16xf32>
      %c0_21 = arith.constant 0 : index
      %c0_22 = arith.constant 0 : index
      %38 = vector.load %arg7[%c0_21, %c0_22] : memref<1x16xf32, #tpu.memory_space<vmem>>, vector<1x16xf32>
      %39 = vector.broadcast %38 : vector<1x16xf32> to vector<8x16xf32>
      %40 = arith.addf %37, %39 : vector<8x16xf32>
      %41 = math.tanh %40 : vector<8x16xf32>
      %c0_23 = arith.constant 0 : index
      %c0_24 = arith.constant 0 : index
      %42 = vector.load %arg3[%c0_23, %c0_24] : memref<8x4xf32, #tpu.memory_space<vmem>>, vector<8x4xf32>
      %43 = arith.truncf %42 : vector<8x4xf32> to vector<8x4xbf16>
      %44 = arith.truncf %41 : vector<8x16xf32> to vector<8x16xbf16>
      %c0_25 = arith.constant 0 : index
      %c0_26 = arith.constant 0 : index
      %45 = vector.load %arg8[%c0_25, %c0_26] : memref<16x64xbf16, #tpu.memory_space<vmem>>, vector<16x64xbf16>
      %cst_27 = arith.constant dense<0.000000e+00> : vector<8x64xf32>
      %46 = tpu.matmul %44, %45, %cst_27 {dimension_numbers = #tpu.dot_dimension_numbers<[1], [0], [0], [1], [0, 0, 1, 1], [], []>} : vector<8x16xbf16>, vector<16x64xbf16>, vector<8x64xf32> -> vector<8x64xf32>
      %c0_28 = arith.constant 0 : index
      %c0_29 = arith.constant 0 : index
      %47 = vector.load %arg9[%c0_28, %c0_29] : memref<4x64xbf16, #tpu.memory_space<vmem>>, vector<4x64xbf16>
      %cst_30 = arith.constant dense<0.000000e+00> : vector<8x64xf32>
      %48 = tpu.matmul %43, %47, %cst_30 {dimension_numbers = #tpu.dot_dimension_numbers<[1], [0], [0], [1], [0, 0, 1, 1], [], []>} : vector<8x4xbf16>, vector<4x64xbf16>, vector<8x64xf32> -> vector<8x64xf32>
      %49 = arith.addf %46, %48 : vector<8x64xf32>
      %c0_31 = arith.constant 0 : index
      %c0_32 = arith.constant 0 : index
      %50 = vector.load %arg10[%c0_31, %c0_32] : memref<1x64xf32, #tpu.memory_space<vmem>>, vector<1x64xf32>
      %51 = vector.broadcast %50 : vector<1x64xf32> to vector<8x64xf32>
      %52 = arith.addf %49, %51 : vector<8x64xf32>
      %cst_33 = arith.constant 0.000000e+00 : f32
      %53 = vector.broadcast %cst_33 : f32 to vector<8x64xf32>
      %54 = arith.maximumf %52, %53 : vector<8x64xf32>
      %55 = vector.extract_strided_slice %54 {offsets = [0, 0], sizes = [8, 32], strides = [1, 1]} : vector<8x64xf32> to vector<8x32xf32>
      %56 = arith.truncf %55 : vector<8x32xf32> to vector<8x32xbf16>
      %57 = vector.extract_strided_slice %54 {offsets = [0, 32], sizes = [8, 32], strides = [1, 1]} : vector<8x64xf32> to vector<8x32xf32>
      %58 = arith.truncf %57 : vector<8x32xf32> to vector<8x32xbf16>
      %c0_34 = arith.constant 0 : index
      %c0_35 = arith.constant 0 : index
      %59 = vector.load %arg11[%c0_34, %c0_35] : memref<32x32xbf16, #tpu.memory_space<vmem>>, vector<32x32xbf16>
      %cst_36 = arith.constant dense<0.000000e+00> : vector<8x32xf32>
      %60 = tpu.matmul %56, %59, %cst_36 {dimension_numbers = #tpu.dot_dimension_numbers<[1], [0], [0], [1], [0, 0, 1, 1], [], []>} : vector<8x32xbf16>, vector<32x32xbf16>, vector<8x32xf32> -> vector<8x32xf32>
      %c0_37 = arith.constant 0 : index
      %c0_38 = arith.constant 0 : index
      %61 = vector.load %arg12[%c0_37, %c0_38] : memref<1x32xf32, #tpu.memory_space<vmem>>, vector<1x32xf32>
      %62 = vector.broadcast %61 : vector<1x32xf32> to vector<8x32xf32>
      %63 = arith.addf %60, %62 : vector<8x32xf32>
      %cst_39 = arith.constant 0.000000e+00 : f32
      %64 = vector.broadcast %cst_39 : f32 to vector<8x32xf32>
      %65 = arith.maximumf %63, %64 : vector<8x32xf32>
      %c0_40 = arith.constant 0 : index
      %c0_41 = arith.constant 0 : index
      %66 = vector.load %arg13[%c0_40, %c0_41] : memref<32x32xbf16, #tpu.memory_space<vmem>>, vector<32x32xbf16>
      %cst_42 = arith.constant dense<0.000000e+00> : vector<8x32xf32>
      %67 = tpu.matmul %58, %66, %cst_42 {dimension_numbers = #tpu.dot_dimension_numbers<[1], [0], [0], [1], [0, 0, 1, 1], [], []>} : vector<8x32xbf16>, vector<32x32xbf16>, vector<8x32xf32> -> vector<8x32xf32>
      %c0_43 = arith.constant 0 : index
      %c0_44 = arith.constant 0 : index
      %68 = vector.load %arg14[%c0_43, %c0_44] : memref<1x32xf32, #tpu.memory_space<vmem>>, vector<1x32xf32>
      %69 = vector.broadcast %68 : vector<1x32xf32> to vector<8x32xf32>
      %70 = arith.addf %67, %69 : vector<8x32xf32>
      %cst_45 = arith.constant 0.000000e+00 : f32
      %71 = vector.broadcast %cst_45 : f32 to vector<8x32xf32>
      %72 = arith.maximumf %70, %71 : vector<8x32xf32>
      %c0_46 = arith.constant 0 : index
      %c0_47 = arith.constant 0 : index
      %73 = vector.load %arg15[%c0_46, %c0_47] : memref<1x32xf32, #tpu.memory_space<vmem>>, vector<1x32xf32>
      %74 = vector.broadcast %73 : vector<1x32xf32> to vector<8x32xf32>
      %75 = arith.mulf %65, %74 : vector<8x32xf32>
      %cst_48 = arith.constant dense<0.000000e+00> : vector<8xf32>
      %76 = vector.multi_reduction <add>, %75, %cst_48 [1] : vector<8x32xf32> to vector<8xf32>
      %77 = vector.shape_cast %76 : vector<8xf32> to vector<8x1xf32>
      %c0_49 = arith.constant 0 : index
      %c0_50 = arith.constant 0 : index
      %78 = vector.load %arg16[%c0_49, %c0_50] : memref<1x1xf32, #tpu.memory_space<vmem>>, vector<1x1xf32>
      %79 = vector.broadcast %78 : vector<1x1xf32> to vector<8x1xf32>
      %80 = arith.addf %77, %79 : vector<8x1xf32>
      %c0_51 = arith.constant 0 : index
      %c0_52 = arith.constant 0 : index
      %81 = vector.load %arg19[%c0_51, %c0_52] : memref<8x2xf32, #tpu.memory_space<vmem>>, vector<8x1xf32>
      tpu.vector_store %arg19[%c0_51, %c0_52], %80 {strides = array<i32>} : memref<8x2xf32, #tpu.memory_space<vmem>>, vector<8x1xf32>,
      %c0_53 = arith.constant 0 : index
      %c0_54 = arith.constant 0 : index
      %82 = vector.load %arg17[%c0_53, %c0_54] : memref<1x32xf32, #tpu.memory_space<vmem>>, vector<1x32xf32>
      %83 = vector.broadcast %82 : vector<1x32xf32> to vector<8x32xf32>
      %84 = arith.mulf %72, %83 : vector<8x32xf32>
      %cst_55 = arith.constant dense<0.000000e+00> : vector<8xf32>
      %85 = vector.multi_reduction <add>, %84, %cst_55 [1] : vector<8x32xf32> to vector<8xf32>
      %86 = vector.shape_cast %85 : vector<8xf32> to vector<8x1xf32>
      %c0_56 = arith.constant 0 : index
      %c0_57 = arith.constant 0 : index
      %87 = vector.load %arg18[%c0_56, %c0_57] : memref<1x1xf32, #tpu.memory_space<vmem>>, vector<1x1xf32>
      %88 = vector.broadcast %87 : vector<1x1xf32> to vector<8x1xf32>
      %89 = arith.addf %86, %88 : vector<8x1xf32>
      %c0_58 = arith.constant 0 : index
      %c1 = arith.constant 1 : index
      %90 = vector.load %arg19[%c0_58, %c1] : memref<8x2xf32, #tpu.memory_space<vmem>>, vector<8x1xf32>
      tpu.vector_store %arg19[%c0_58, %c1], %89 {strides = array<i32>} : memref<8x2xf32, #tpu.memory_space<vmem>>, vector<8x1xf32>,
    } else {
    }
    return
  }
  func.func @transform_0(%arg0: i32, %arg1: i32) -> (i32, i32) {
    %c0_i32 = arith.constant 0 : i32
    return %arg0, %arg1 : i32, i32
  }
  func.func @transform_1(%arg0: i32, %arg1: i32) -> (i32, i32) {
    %c0_i32 = arith.constant 0 : i32
    %c0_i32_0 = arith.constant 0 : i32
    return %arg0, %c0_i32 : i32, i32
  }
  func.func @transform_2(%arg0: i32, %arg1: i32) -> (i32, i32) {
    %c0_i32 = arith.constant 0 : i32
    %c0_i32_0 = arith.constant 0 : i32
    return %arg1, %c0_i32 : i32, i32
  }
  func.func @transform_3(%arg0: i32, %arg1: i32) -> (i32, i32) {
    %c0_i32 = arith.constant 0 : i32
    %c0_i32_0 = arith.constant 0 : i32
    %c0_i32_1 = arith.constant 0 : i32
    return %c0_i32, %c0_i32_0 : i32, i32
  }
  func.func @transform_4(%arg0: i32, %arg1: i32) -> (i32, i32) {
    %c0_i32 = arith.constant 0 : i32
    %c0_i32_0 = arith.constant 0 : i32
    %c0_i32_1 = arith.constant 0 : i32
    return %c0_i32, %c0_i32_0 : i32, i32
  }
  func.func @transform_5(%arg0: i32, %arg1: i32) -> (i32, i32) {
    %c0_i32 = arith.constant 0 : i32
    %c0_i32_0 = arith.constant 0 : i32
    %c0_i32_1 = arith.constant 0 : i32
    return %c0_i32, %c0_i32_0 : i32, i32
  }
  func.func @transform_6(%arg0: i32, %arg1: i32) -> (i32, i32) {
    %c0_i32 = arith.constant 0 : i32
    %c0_i32_0 = arith.constant 0 : i32
    %c0_i32_1 = arith.constant 0 : i32
    return %c0_i32, %c0_i32_0 : i32, i32
  }
  func.func @transform_7(%arg0: i32, %arg1: i32) -> (i32, i32) {
    %c0_i32 = arith.constant 0 : i32
    %c0_i32_0 = arith.constant 0 : i32
    %c0_i32_1 = arith.constant 0 : i32
    return %c0_i32, %c0_i32_0 : i32, i32
  }
  func.func @transform_8(%arg0: i32, %arg1: i32) -> (i32, i32) {
    %c0_i32 = arith.constant 0 : i32
    %c0_i32_0 = arith.constant 0 : i32
    %c0_i32_1 = arith.constant 0 : i32
    return %c0_i32, %c0_i32_0 : i32, i32
  }
  func.func @transform_9(%arg0: i32, %arg1: i32) -> (i32, i32) {
    %c0_i32 = arith.constant 0 : i32
    %c0_i32_0 = arith.constant 0 : i32
    %c0_i32_1 = arith.constant 0 : i32
    return %c0_i32, %c0_i32_0 : i32, i32
  }
  func.func @transform_10(%arg0: i32, %arg1: i32) -> (i32, i32) {
    %c0_i32 = arith.constant 0 : i32
    %c0_i32_0 = arith.constant 0 : i32
    %c0_i32_1 = arith.constant 0 : i32
    return %c0_i32, %c0_i32_0 : i32, i32
  }
  func.func @transform_11(%arg0: i32, %arg1: i32) -> (i32, i32) {
    %c0_i32 = arith.constant 0 : i32
    %c0_i32_0 = arith.constant 0 : i32
    %c0_i32_1 = arith.constant 0 : i32
    return %c0_i32, %c0_i32_0 : i32, i32
  }
  func.func @transform_12(%arg0: i32, %arg1: i32) -> (i32, i32) {
    %c0_i32 = arith.constant 0 : i32
    %c0_i32_0 = arith.constant 0 : i32
    %c0_i32_1 = arith.constant 0 : i32
    return %c0_i32, %c0_i32_0 : i32, i32
  }
  func.func @transform_13(%arg0: i32, %arg1: i32) -> (i32, i32) {
    %c0_i32 = arith.constant 0 : i32
    %c0_i32_0 = arith.constant 0 : i32
    %c0_i32_1 = arith.constant 0 : i32
    return %c0_i32, %c0_i32_0 : i32, i32
  }
  func.func @transform_14(%arg0: i32, %arg1: i32) -> (i32, i32) {
    %c0_i32 = arith.constant 0 : i32
    %c0_i32_0 = arith.constant 0 : i32
    %c0_i32_1 = arith.constant 0 : i32
    return %c0_i32, %c0_i32_0 : i32, i32
  }
  func.func @transform_15(%arg0: i32, %arg1: i32) -> (i32, i32) {
    %c0_i32 = arith.constant 0 : i32
    %c0_i32_0 = arith.constant 0 : i32
    %c0_i32_1 = arith.constant 0 : i32
    return %c0_i32, %c0_i32_0 : i32, i32
  }
  func.func @transform_16(%arg0: i32, %arg1: i32) -> (i32, i32) {
    %c0_i32 = arith.constant 0 : i32
    %c0_i32_0 = arith.constant 0 : i32
    %c0_i32_1 = arith.constant 0 : i32
    return %c0_i32, %c0_i32_0 : i32, i32
  }
  func.func @transform_17(%arg0: i32, %arg1: i32) -> (i32, i32) {
    %c0_i32 = arith.constant 0 : i32
    %c0_i32_0 = arith.constant 0 : i32
    return %arg0, %c0_i32 : i32, i32
  }
}

module attributes {stable_mosaic.version = 11 : i64} {
  func.func @critic_kernel(%arg0: i32, %arg1: i32, %arg2: memref<8x32xf32, #tpu.memory_space<vmem>>, %arg3: memref<8x4xf32, #tpu.memory_space<vmem>>, %arg4: memref<32x16xbf16, #tpu.memory_space<vmem>>, %arg5: memref<1x16xf32, #tpu.memory_space<vmem>>, %arg6: memref<1x16xf32, #tpu.memory_space<vmem>>, %arg7: memref<1x16xf32, #tpu.memory_space<vmem>>, %arg8: memref<16x64xbf16, #tpu.memory_space<vmem>>, %arg9: memref<4x64xbf16, #tpu.memory_space<vmem>>, %arg10: memref<1x64xf32, #tpu.memory_space<vmem>>, %arg11: memref<32x32xbf16, #tpu.memory_space<vmem>>, %arg12: memref<1x32xf32, #tpu.memory_space<vmem>>, %arg13: memref<32x32xbf16, #tpu.memory_space<vmem>>, %arg14: memref<1x32xf32, #tpu.memory_space<vmem>>, %arg15: memref<1x32xf32, #tpu.memory_space<vmem>>, %arg16: memref<1x1xf32, #tpu.memory_space<vmem>>, %arg17: memref<1x32xf32, #tpu.memory_space<vmem>>, %arg18: memref<1x1xf32, #tpu.memory_space<vmem>>, %arg19: memref<8x2xf32, #tpu.memory_space<vmem>>, %arg20: memref<8x16xf32, #tpu.memory_space<vmem>>) attributes {dimension_semantics = [#tpu.dimension_semantics<parallel>, #tpu.dimension_semantics<arbitrary>], iteration_bounds = array<i64: 1, 1>, scalar_prefetch = 0 : i64, scratch_operands = 1 : i64, tpu.core_type = #tpu.core_type<tc>, window_params = [{transform_indices = @transform_0, window_bounds = array<i64: 8, 32>}, {transform_indices = @transform_1, window_bounds = array<i64: 8, 4>}, {transform_indices = @transform_2, window_bounds = array<i64: 32, 16>}, {pipeline_mode = #tpu.pipeline_mode<synchronous>, transform_indices = @transform_3, window_bounds = array<i64: 1, 16>}, {pipeline_mode = #tpu.pipeline_mode<synchronous>, transform_indices = @transform_4, window_bounds = array<i64: 1, 16>}, {pipeline_mode = #tpu.pipeline_mode<synchronous>, transform_indices = @transform_5, window_bounds = array<i64: 1, 16>}, {pipeline_mode = #tpu.pipeline_mode<synchronous>, transform_indices = @transform_6, window_bounds = array<i64: 16, 64>}, {pipeline_mode = #tpu.pipeline_mode<synchronous>, transform_indices = @transform_7, window_bounds = array<i64: 4, 64>}, {pipeline_mode = #tpu.pipeline_mode<synchronous>, transform_indices = @transform_8, window_bounds = array<i64: 1, 64>}, {pipeline_mode = #tpu.pipeline_mode<synchronous>, transform_indices = @transform_9, window_bounds = array<i64: 32, 32>}, {pipeline_mode = #tpu.pipeline_mode<synchronous>, transform_indices = @transform_10, window_bounds = array<i64: 1, 32>}, {pipeline_mode = #tpu.pipeline_mode<synchronous>, transform_indices = @transform_11, window_bounds = array<i64: 32, 32>}, {pipeline_mode = #tpu.pipeline_mode<synchronous>, transform_indices = @transform_12, window_bounds = array<i64: 1, 32>}, {pipeline_mode = #tpu.pipeline_mode<synchronous>, transform_indices = @transform_13, window_bounds = array<i64: 1, 32>}, {pipeline_mode = #tpu.pipeline_mode<synchronous>, transform_indices = @transform_14, window_bounds = array<i64: 1, 1>}, {pipeline_mode = #tpu.pipeline_mode<synchronous>, transform_indices = @transform_15, window_bounds = array<i64: 1, 32>}, {pipeline_mode = #tpu.pipeline_mode<synchronous>, transform_indices = @transform_16, window_bounds = array<i64: 1, 1>}, {transform_indices = @transform_17, window_bounds = array<i64: 8, 2>}]} {
    %c0_i32 = arith.constant 0 : i32
    %0 = arith.cmpi eq, %arg1, %c0_i32 : i32
    %1 = arith.extui %0 : i1 to i32
    %c0_i32_0 = arith.constant 0 : i32
    %2 = arith.cmpi ne, %1, %c0_i32_0 : i32
    scf.if %2 {
      %cst_10 = arith.constant 0.000000e+00 : f32
      %13 = vector.broadcast %cst_10 : f32 to vector<8x16xf32>
      %c0_11 = arith.constant 0 : index
      %c0_12 = arith.constant 0 : index
      %14 = vector.load %arg20[%c0_11, %c0_12] : memref<8x16xf32, #tpu.memory_space<vmem>>, vector<8x16xf32>
      tpu.vector_store %arg20[%c0_11, %c0_12], %13 {strides = array<i32>} : memref<8x16xf32, #tpu.memory_space<vmem>>, vector<8x16xf32>,
    } else {
    }
    %c0 = arith.constant 0 : index
    %c0_1 = arith.constant 0 : index
    %3 = vector.load %arg20[%c0, %c0_1] : memref<8x16xf32, #tpu.memory_space<vmem>>, vector<8x16xf32>
    %c0_2 = arith.constant 0 : index
    %c0_3 = arith.constant 0 : index
    %4 = vector.load %arg2[%c0_2, %c0_3] : memref<8x32xf32, #tpu.memory_space<vmem>>, vector<8x32xf32>
    %5 = arith.truncf %4 : vector<8x32xf32> to vector<8x32xbf16>
    %c0_4 = arith.constant 0 : index
    %c0_5 = arith.constant 0 : index
    %6 = vector.load %arg4[%c0_4, %c0_5] : memref<32x16xbf16, #tpu.memory_space<vmem>>, vector<32x16xbf16>
    %cst = arith.constant dense<0.000000e+00> : vector<8x16xf32>
    %7 = tpu.matmul %5, %6, %cst {dimension_numbers = #tpu.dot_dimension_numbers<[1], [0], [0], [1], [0, 0, 1, 1], [], []>} : vector<8x32xbf16>, vector<32x16xbf16>, vector<8x16xf32> -> vector<8x16xf32>
    %8 = arith.addf %3, %7 : vector<8x16xf32>
    %c0_6 = arith.constant 0 : index
    %c0_7 = arith.constant 0 : index
    %9 = vector.load %arg20[%c0_6, %c0_7] : memref<8x16xf32, #tpu.memory_space<vmem>>, vector<8x16xf32>
    tpu.vector_store %arg20[%c0_6, %c0_7], %8 {strides = array<i32>} : memref<8x16xf32, #tpu.memory_space<vmem>>, vector<8x16xf32>,
    %c0_i32_8 = arith.constant 0 : i32
    %10 = arith.cmpi eq, %arg1, %c0_i32_8 : i32
    %11 = arith.extui %10 : i1 to i32
    %c0_i32_9 = arith.constant 0 : i32
    %12 = arith.cmpi ne, %11, %c0_i32_9 : i32
    scf.if %12 {
      %c0_10 = arith.constant 0 : index
      %c0_11 = arith.constant 0 : index
      %13 = vector.load %arg20[%c0_10, %c0_11] : memref<8x16xf32, #tpu.memory_space<vmem>>, vector<8x16xf32>
      %c0_12 = arith.constant 0 : index
      %c0_13 = arith.constant 0 : index
      %14 = vector.load %arg5[%c0_12, %c0_13] : memref<1x16xf32, #tpu.memory_space<vmem>>, vector<1x16xf32>
      %15 = vector.broadcast %14 : vector<1x16xf32> to vector<8x16xf32>
      %16 = arith.addf %13, %15 : vector<8x16xf32>
      %cst_14 = arith.constant dense<0.000000e+00> : vector<8xf32>
      %17 = vector.multi_reduction <add>, %16, %cst_14 [1] : vector<8x16xf32> to vector<8xf32>
      %18 = vector.shape_cast %17 : vector<8xf32> to vector<8x1xf32>
      %cst_15 = arith.constant 1.600000e+01 : f32
      %19 = vector.broadcast %cst_15 : f32 to vector<8x1xf32>
      %20 = arith.divf %18, %19 : vector<8x1xf32>
      %21 = vector.broadcast %20 : vector<8x1xf32> to vector<8x16xf32>
      %22 = arith.subf %16, %21 : vector<8x16xf32>
      %23 = arith.mulf %22, %22 : vector<8x16xf32>
      %cst_16 = arith.constant dense<0.000000e+00> : vector<8xf32>
      %24 = vector.multi_reduction <add>, %23, %cst_16 [1] : vector<8x16xf32> to vector<8xf32>
      %25 = vector.shape_cast %24 : vector<8xf32> to vector<8x1xf32>
      %cst_17 = arith.constant 1.600000e+01 : f32
      %26 = vector.broadcast %cst_17 : f32 to vector<8x1xf32>
      %27 = arith.divf %25, %26 : vector<8x1xf32>
      %28 = vector.broadcast %20 : vector<8x1xf32> to vector<8x16xf32>
      %29 = arith.subf %16, %28 : vector<8x16xf32>
      %cst_18 = arith.constant 9.99999974E-6 : f32
      %30 = vector.broadcast %cst_18 : f32 to vector<8x1xf32>
      %31 = arith.addf %27, %30 : vector<8x1xf32>
      %32 = math.rsqrt %31 : vector<8x1xf32>
      %33 = vector.broadcast %32 : vector<8x1xf32> to vector<8x16xf32>
      %34 = arith.mulf %29, %33 : vector<8x16xf32>
      %c0_19 = arith.constant 0 : index
      %c0_20 = arith.constant 0 : index
      %35 = vector.load %arg6[%c0_19, %c0_20] : memref<1x16xf32, #tpu.memory_space<vmem>>, vector<1x16xf32>
      %36 = vector.broadcast %35 : vector<1x16xf32> to vector<8x16xf32>
      %37 = arith.mulf %34, %36 : vector<8x16xf32>
      %c0_21 = arith.constant 0 : index
      %c0_22 = arith.constant 0 : index
      %38 = vector.load %arg7[%c0_21, %c0_22] : memref<1x16xf32, #tpu.memory_space<vmem>>, vector<1x16xf32>
      %39 = vector.broadcast %38 : vector<1x16xf32> to vector<8x16xf32>
      %40 = arith.addf %37, %39 : vector<8x16xf32>
      %41 = math.tanh %40 : vector<8x16xf32>
      %c0_23 = arith.constant 0 : index
      %c0_24 = arith.constant 0 : index
      %42 = vector.load %arg3[%c0_23, %c0_24] : memref<8x4xf32, #tpu.memory_space<vmem>>, vector<8x4xf32>
      %43 = arith.truncf %42 : vector<8x4xf32> to vector<8x4xbf16>
      %44 = arith.truncf %41 : vector<8x16xf32> to vector<8x16xbf16>
      %c0_25 = arith.constant 0 : index
      %c0_26 = arith.constant 0 : index
      %45 = vector.load %arg8[%c0_25, %c0_26] : memref<16x64xbf16, #tpu.memory_space<vmem>>, vector<16x64xbf16>
      %cst_27 = arith.constant dense<0.000000e+00> : vector<8x64xf32>
      %46 = tpu.matmul %44, %45, %cst_27 {dimension_numbers = #tpu.dot_dimension_numbers<[1], [0], [0], [1], [0, 0, 1, 1], [], []>} : vector<8x16xbf16>, vector<16x64xbf16>, vector<8x64xf32> -> vector<8x64xf32>
      %c0_28 = arith.constant 0 : index
      %c0_29 = arith.constant 0 : index
      %47 = vector.load %arg9[%c0_28, %c0_29] : memref<4x64xbf16, #tpu.memory_space<vmem>>, vector<4x64xbf16>
      %cst_30 = arith.constant dense<0.000000e+00> : vector<8x64xf32>
      %48 = tpu.matmul %43, %47, %cst_30 {dimension_numbers = #tpu.dot_dimension_numbers<[1], [0], [0], [1], [0, 0, 1, 1], [], []>} : vector<8x4xbf16>, vector<4x64xbf16>, vector<8x64xf32> -> vector<8x64xf32>
      %49 = arith.addf %46, %48 : vector<8x64xf32>
      %c0_31 = arith.constant 0 : index
      %c0_32 = arith.constant 0 : index
      %50 = vector.load %arg10[%c0_31, %c0_32] : memref<1x64xf32, #tpu.memory_space<vmem>>, vector<1x64xf32>
      %51 = vector.broadcast %50 : vector<1x64xf32> to vector<8x64xf32>
      %52 = arith.addf %49, %51 : vector<8x64xf32>
      %cst_33 = arith.constant 0.000000e+00 : f32
      %53 = vector.broadcast %cst_33 : f32 to vector<8x64xf32>
      %54 = arith.maximumf %52, %53 : vector<8x64xf32>
      %55 = vector.extract_strided_slice %54 {offsets = [0, 0], sizes = [8, 32], strides = [1, 1]} : vector<8x64xf32> to vector<8x32xf32>
      %56 = arith.truncf %55 : vector<8x32xf32> to vector<8x32xbf16>
      %57 = vector.extract_strided_slice %54 {offsets = [0, 32], sizes = [8, 32], strides = [1, 1]} : vector<8x64xf32> to vector<8x32xf32>
      %58 = arith.truncf %57 : vector<8x32xf32> to vector<8x32xbf16>
      %c0_34 = arith.constant 0 : index
      %c0_35 = arith.constant 0 : index
      %59 = vector.load %arg11[%c0_34, %c0_35] : memref<32x32xbf16, #tpu.memory_space<vmem>>, vector<32x32xbf16>
      %cst_36 = arith.constant dense<0.000000e+00> : vector<8x32xf32>
      %60 = tpu.matmul %56, %59, %cst_36 {dimension_numbers = #tpu.dot_dimension_numbers<[1], [0], [0], [1], [0, 0, 1, 1], [], []>} : vector<8x32xbf16>, vector<32x32xbf16>, vector<8x32xf32> -> vector<8x32xf32>
      %c0_37 = arith.constant 0 : index
      %c0_38 = arith.constant 0 : index
      %61 = vector.load %arg12[%c0_37, %c0_38] : memref<1x32xf32, #tpu.memory_space<vmem>>, vector<1x32xf32>
      %62 = vector.broadcast %61 : vector<1x32xf32> to vector<8x32xf32>
      %63 = arith.addf %60, %62 : vector<8x32xf32>
      %cst_39 = arith.constant 0.000000e+00 : f32
      %64 = vector.broadcast %cst_39 : f32 to vector<8x32xf32>
      %65 = arith.maximumf %63, %64 : vector<8x32xf32>
      %c0_40 = arith.constant 0 : index
      %c0_41 = arith.constant 0 : index
      %66 = vector.load %arg13[%c0_40, %c0_41] : memref<32x32xbf16, #tpu.memory_space<vmem>>, vector<32x32xbf16>
      %cst_42 = arith.constant dense<0.000000e+00> : vector<8x32xf32>
      %67 = tpu.matmul %58, %66, %cst_42 {dimension_numbers = #tpu.dot_dimension_numbers<[1], [0], [0], [1], [0, 0, 1, 1], [], []>} : vector<8x32xbf16>, vector<32x32xbf16>, vector<8x32xf32> -> vector<8x32xf32>
      %c0_43 = arith.constant 0 : index
      %c0_44 = arith.constant 0 : index
      %68 = vector.load %arg14[%c0_43, %c0_44] : memref<1x32xf32, #tpu.memory_space<vmem>>, vector<1x32xf32>
      %69 = vector.broadcast %68 : vector<1x32xf32> to vector<8x32xf32>
      %70 = arith.addf %67, %69 : vector<8x32xf32>
      %cst_45 = arith.constant 0.000000e+00 : f32
      %71 = vector.broadcast %cst_45 : f32 to vector<8x32xf32>
      %72 = arith.maximumf %70, %71 : vector<8x32xf32>
      %c0_46 = arith.constant 0 : index
      %c0_47 = arith.constant 0 : index
      %73 = vector.load %arg15[%c0_46, %c0_47] : memref<1x32xf32, #tpu.memory_space<vmem>>, vector<1x32xf32>
      %74 = vector.broadcast %73 : vector<1x32xf32> to vector<8x32xf32>
      %75 = arith.mulf %65, %74 : vector<8x32xf32>
      %cst_48 = arith.constant dense<0.000000e+00> : vector<8xf32>
      %76 = vector.multi_reduction <add>, %75, %cst_48 [1] : vector<8x32xf32> to vector<8xf32>
      %77 = vector.shape_cast %76 : vector<8xf32> to vector<8x1xf32>
      %c0_49 = arith.constant 0 : index
      %c0_50 = arith.constant 0 : index
      %78 = vector.load %arg16[%c0_49, %c0_50] : memref<1x1xf32, #tpu.memory_space<vmem>>, vector<1x1xf32>
      %79 = vector.broadcast %78 : vector<1x1xf32> to vector<8x1xf32>
      %80 = arith.addf %77, %79 : vector<8x1xf32>
      %c0_51 = arith.constant 0 : index
      %c0_52 = arith.constant 0 : index
      %81 = vector.load %arg19[%c0_51, %c0_52] : memref<8x2xf32, #tpu.memory_space<vmem>>, vector<8x1xf32>
      tpu.vector_store %arg19[%c0_51, %c0_52], %80 {strides = array<i32>} : memref<8x2xf32, #tpu.memory_space<vmem>>, vector<8x1xf32>,
      %c0_53 = arith.constant 0 : index
      %c0_54 = arith.constant 0 : index
      %82 = vector.load %arg17[%c0_53, %c0_54] : memref<1x32xf32, #tpu.memory_space<vmem>>, vector<1x32xf32>
      %83 = vector.broadcast %82 : vector<1x32xf32> to vector<8x32xf32>
      %84 = arith.mulf %72, %83 : vector<8x32xf32>
      %cst_55 = arith.constant dense<0.000000e+00> : vector<8xf32>
      %85 = vector.multi_reduction <add>, %84, %cst_55 [1] : vector<8x32xf32> to vector<8xf32>
      %86 = vector.shape_cast %85 : vector<8xf32> to vector<8x1xf32>
      %c0_56 = arith.constant 0 : index
      %c0_57 = arith.constant 0 : index
      %87 = vector.load %arg18[%c0_56, %c0_57] : memref<1x1xf32, #tpu.memory_space<vmem>>, vector<1x1xf32>
      %88 = vector.broadcast %87 : vector<1x1xf32> to vector<8x1xf32>
      %89 = arith.addf %86, %88 : vector<8x1xf32>
      %c0_58 = arith.constant 0 : index
      %c1 = arith.constant 1 : index
      %90 = vector.load %arg19[%c0_58, %c1] : memref<8x2xf32, #tpu.memory_space<vmem>>, vector<8x1xf32>
      tpu.vector_store %arg19[%c0_58, %c1], %89 {strides = array<i32>} : memref<8x2xf32, #tpu.memory_space<vmem>>, vector<8x1xf32>,
    } else {
    }
    return
  }
  func.func @transform_0(%arg0: i32, %arg1: i32) -> (i32, i32) {
    %c0_i32 = arith.constant 0 : i32
    return %arg0, %arg1 : i32, i32
  }
  func.func @transform_1(%arg0: i32, %arg1: i32) -> (i32, i32) {
    %c0_i32 = arith.constant 0 : i32
    %c0_i32_0 = arith.constant 0 : i32
    return %arg0, %c0_i32 : i32, i32
  }
  func.func @transform_2(%arg0: i32, %arg1: i32) -> (i32, i32) {
    %c0_i32 = arith.constant 0 : i32
    %c0_i32_0 = arith.constant 0 : i32
    return %arg1, %c0_i32 : i32, i32
  }
  func.func @transform_3(%arg0: i32, %arg1: i32) -> (i32, i32) {
    %c0_i32 = arith.constant 0 : i32
    %c0_i32_0 = arith.constant 0 : i32
    %c0_i32_1 = arith.constant 0 : i32
    return %c0_i32, %c0_i32_0 : i32, i32
  }
  func.func @transform_4(%arg0: i32, %arg1: i32) -> (i32, i32) {
    %c0_i32 = arith.constant 0 : i32
    %c0_i32_0 = arith.constant 0 : i32
    %c0_i32_1 = arith.constant 0 : i32
    return %c0_i32, %c0_i32_0 : i32, i32
  }
  func.func @transform_5(%arg0: i32, %arg1: i32) -> (i32, i32) {
    %c0_i32 = arith.constant 0 : i32
    %c0_i32_0 = arith.constant 0 : i32
    %c0_i32_1 = arith.constant 0 : i32
    return %c0_i32, %c0_i32_0 : i32, i32
  }
  func.func @transform_6(%arg0: i32, %arg1: i32) -> (i32, i32) {
    %c0_i32 = arith.constant 0 : i32
    %c0_i32_0 = arith.constant 0 : i32
    %c0_i32_1 = arith.constant 0 : i32
    return %c0_i32, %c0_i32_0 : i32, i32
  }
  func.func @transform_7(%arg0: i32, %arg1: i32) -> (i32, i32) {
    %c0_i32 = arith.constant 0 : i32
    %c0_i32_0 = arith.constant 0 : i32
    %c0_i32_1 = arith.constant 0 : i32
    return %c0_i32, %c0_i32_0 : i32, i32
  }
  func.func @transform_8(%arg0: i32, %arg1: i32) -> (i32, i32) {
    %c0_i32 = arith.constant 0 : i32
    %c0_i32_0 = arith.constant 0 : i32
    %c0_i32_1 = arith.constant 0 : i32
    return %c0_i32, %c0_i32_0 : i32, i32
  }
  func.func @transform_9(%arg0: i32, %arg1: i32) -> (i32, i32) {
    %c0_i32 = arith.constant 0 : i32
    %c0_i32_0 = arith.constant 0 : i32
    %c0_i32_1 = arith.constant 0 : i32
    return %c0_i32, %c0_i32_0 : i32, i32
  }
  func.func @transform_10(%arg0: i32, %arg1: i32) -> (i32, i32) {
    %c0_i32 = arith.constant 0 : i32
    %c0_i32_0 = arith.constant 0 : i32
    %c0_i32_1 = arith.constant 0 : i32
    return %c0_i32, %c0_i32_0 : i32, i32
  }
  func.func @transform_11(%arg0: i32, %arg1: i32) -> (i32, i32) {
    %c0_i32 = arith.constant 0 : i32
    %c0_i32_0 = arith.constant 0 : i32
    %c0_i32_1 = arith.constant 0 : i32
    return %c0_i32, %c0_i32_0 : i32, i32
  }
  func.func @transform_12(%arg0: i32, %arg1: i32) -> (i32, i32) {
    %c0_i32 = arith.constant 0 : i32
    %c0_i32_0 = arith.constant 0 : i32
    %c0_i32_1 = arith.constant 0 : i32
    return %c0_i32, %c0_i32_0 : i32, i32
  }
  func.func @transform_13(%arg0: i32, %arg1: i32) -> (i32, i32) {
    %c0_i32 = arith.constant 0 : i32
    %c0_i32_0 = arith.constant 0 : i32
    %c0_i32_1 = arith.constant 0 : i32
    return %c0_i32, %c0_i32_0 : i32, i32
  }
  func.func @transform_14(%arg0: i32, %arg1: i32) -> (i32, i32) {
    %c0_i32 = arith.constant 0 : i32
    %c0_i32_0 = arith.constant 0 : i32
    %c0_i32_1 = arith.constant 0 : i32
    return %c0_i32, %c0_i32_0 : i32, i32
  }
  func.func @transform_15(%arg0: i32, %arg1: i32) -> (i32, i32) {
    %c0_i32 = arith.constant 0 : i32
    %c0_i32_0 = arith.constant 0 : i32
    %c0_i32_1 = arith.constant 0 : i32
    return %c0_i32, %c0_i32_0 : i32, i32
  }
  func.func @transform_16(%arg0: i32, %arg1: i32) -> (i32, i32) {
    %c0_i32 = arith.constant 0 : i32
    %c0_i32_0 = arith.constant 0 : i32
    %c0_i32_1 = arith.constant 0 : i32
    return %c0_i32, %c0_i32_0 : i32, i32
  }
  func.func @transform_17(%arg0: i32, %arg1: i32) -> (i32, i32) {
    %c0_i32 = arith.constant 0 : i32
    %c0_i32_0 = arith.constant 0 : i32
    return %arg0, %c0_i32 : i32, i32
  }
}

</mosaic_0001>

<llo_original>
// kernel: tpu_custom_call.1
$region0: #{tpu_custom_call.1}
  #allocation0 [shape = 'u32[]', space=smem, size = 0x4, offset = 0x4, fixed_abs, tag = 'smem constant byte address 0x4 - core index']
  #allocation1 [shape = 'u32[144,128]{1,0:T(1,128)}', space=vmem, size = 0x12000, scoped, tag = 'internal scratch']
  #allocation2 [shape = 'f32[8,16]{1,0:T(8,128)}', space=vmem, size = 0x1000, scoped, tag = 'scratch operand']
  #allocation3 [shape = 'f32[1,1]{1,0:T(1,128)S(1)}', space=vmem, size = 0x200, scoped, tag = 'scoped memory for tpu_custom_call.1']
  #allocation4 [shape = 'f32[1,1]{1,0:T(1,128)S(1)}', space=vmem, size = 0x200, scoped, tag = 'scoped memory for tpu_custom_call.1']
  %s0 = inlined_call_operand.hbm [shape: f32[8,32], index: 0, kind: input, shape index: {}]
  %s1 = inlined_call_operand.vmem [shape: f32[8,4], index: 1, kind: input, shape index: {}]
  %s2 = inlined_call_operand.vmem [shape: bf16[32,16], index: 2, kind: input, shape index: {}]
  %s3 = inlined_call_operand.vmem [shape: f32[1,16], index: 3, kind: input, shape index: {}]
  %s4 = inlined_call_operand.vmem [shape: f32[1,16], index: 4, kind: input, shape index: {}]
  %s5 = inlined_call_operand.vmem [shape: f32[1,16], index: 5, kind: input, shape index: {}]
  %s6 = inlined_call_operand.vmem [shape: bf16[16,64], index: 6, kind: input, shape index: {}]
  %s7 = inlined_call_operand.vmem [shape: bf16[4,64], index: 7, kind: input, shape index: {}]
  %s8 = inlined_call_operand.vmem [shape: f32[1,64], index: 8, kind: input, shape index: {}]
  %s9 = inlined_call_operand.vmem [shape: bf16[32,32], index: 9, kind: input, shape index: {}]
  %s10 = inlined_call_operand.vmem [shape: f32[1,32], index: 10, kind: input, shape index: {}]
  %s11 = inlined_call_operand.vmem [shape: bf16[32,32], index: 11, kind: input, shape index: {}]
  %s12 = inlined_call_operand.vmem [shape: f32[1,32], index: 12, kind: input, shape index: {}]
  %s13 = inlined_call_operand.vmem [shape: f32[1,32], index: 13, kind: input, shape index: {}]
  %s14 = inlined_call_operand.<no memory space> [shape: f32[1,1], index: 14, kind: input, shape index: {}]
  %s15 = inlined_call_operand.vmem [shape: f32[1,32], index: 15, kind: input, shape index: {}]
  %s16 = inlined_call_operand.<no memory space> [shape: f32[1,1], index: 16, kind: input, shape index: {}]
  %s17 = inlined_call_operand.vmem [shape: f32[8,2], index: 17, kind: output, shape index: {}]
  %s18 = sld [smem:[#allocation0]]
  $region90: #{tpu_custom_call.1} parent=0
    _
  %s20 = ssub.s32 1, %s18
  %s21 = scalar_select 0, %s20, %s18
  %v22 = vstv %s14
  %23 = vst [vmem:[#allocation3] sm:$0x1] %v22
  %v24 = vstv %s16
  %25 = vst [vmem:[#allocation4] sm:$0x1] %v24
  $region1: #{tpu_custom_call.1} parent=0
    #allocation5 [shape = 'u8[4096]{0}', space=vmem, size = 0x1000, scoped, tag = 'input window, operand 0, single buffered']
    #allocation6 [shape = 's32[1]{0}', space=sflag, size = 0x4, scoped, tag = 'scoped memory for tpu_custom_call.1']
    %26 = vsyncpa [#allocation6], 0
    // Predicated region
    $region2: #{tpu_custom_call.1} parent=1 // pred_check
      _
    $region3: #{tpu_custom_call.1} parent=1 // pred_check_branch
      %28 = sbr.rel (0) target = $region5
    $region4: #{tpu_custom_call.1} parent=1 // pred_region
      %s30 = ssub.s32 128, 128
      %31 = vsyncadd [#allocation6], %s30
      %s33 = sshll.u32 [#allocation5], 4
      %s34 = int_to_ptr.vmem [resolvable:$true] %s33
      %36 = dma.hbm_to_vmem [thread:$0]  %s0, 128, %s34, [#allocation6]
    $region5: #{tpu_custom_call.1} parent=1 // pred_fallthru
      _
    // Predicated region
    $region6: #{tpu_custom_call.1} parent=1 // pred_check
      _
    $region7: #{tpu_custom_call.1} parent=1 // pred_check_branch
      %38 = sbr.rel (0) target = $region9
    $region8: #{tpu_custom_call.1} parent=1 // pred_region
      _
    $region9: #{tpu_custom_call.1} parent=1 // pred_fallthru
      _
    // Predicated region
    $region10: #{tpu_custom_call.1} parent=1 // pred_check
      _
    $region11: #{tpu_custom_call.1} parent=1 // pred_check_branch
      %40 = sbr.rel (0) target = $region13
    $region12: #{tpu_custom_call.1} parent=1 // pred_region
      _
    $region13: #{tpu_custom_call.1} parent=1 // pred_fallthru
      _
    // Predicated region
    $region14: #{tpu_custom_call.1} parent=1 // pred_check
      _
    $region15: #{tpu_custom_call.1} parent=1 // pred_check_branch
      %42 = sbr.rel (0) target = $region17
    $region16: #{tpu_custom_call.1} parent=1 // pred_region
      _
    $region17: #{tpu_custom_call.1} parent=1 // pred_fallthru
      _
    // Predicated region
    $region18: #{tpu_custom_call.1} parent=1 // pred_check
      _
    $region19: #{tpu_custom_call.1} parent=1 // pred_check_branch
      %44 = sbr.rel (0) target = $region21
    $region20: #{tpu_custom_call.1} parent=1 // pred_region
      _
    $region21: #{tpu_custom_call.1} parent=1 // pred_fallthru
      _
    // Predicated region
    $region22: #{tpu_custom_call.1} parent=1 // pred_check
      _
    $region23: #{tpu_custom_call.1} parent=1 // pred_check_branch
      %46 = sbr.rel (0) target = $region25
    $region24: #{tpu_custom_call.1} parent=1 // pred_region
      _
    $region25: #{tpu_custom_call.1} parent=1 // pred_fallthru
      _
    // Predicated region
    $region26: #{tpu_custom_call.1} parent=1 // pred_check
      _
    $region27: #{tpu_custom_call.1} parent=1 // pred_check_branch
      %48 = sbr.rel (0) target = $region29
    $region28: #{tpu_custom_call.1} parent=1 // pred_region
      _
    $region29: #{tpu_custom_call.1} parent=1 // pred_fallthru
      _
    // Predicated region
    $region30: #{tpu_custom_call.1} parent=1 // pred_check
      _
    $region31: #{tpu_custom_call.1} parent=1 // pred_check_branch
      %50 = sbr.rel (0) target = $region33
    $region32: #{tpu_custom_call.1} parent=1 // pred_region
      _
    $region33: #{tpu_custom_call.1} parent=1 // pred_fallthru
      _
    // Predicated region
    $region34: #{tpu_custom_call.1} parent=1 // pred_check
      _
    $region35: #{tpu_custom_call.1} parent=1 // pred_check_branch
      %52 = sbr.rel (0) target = $region37
    $region36: #{tpu_custom_call.1} parent=1 // pred_region
      _
    $region37: #{tpu_custom_call.1} parent=1 // pred_fallthru
      _
    // Predicated region
    $region38: #{tpu_custom_call.1} parent=1 // pred_check
      _
    $region39: #{tpu_custom_call.1} parent=1 // pred_check_branch
      %54 = sbr.rel (0) target = $region41
    $region40: #{tpu_custom_call.1} parent=1 // pred_region
      _
    $region41: #{tpu_custom_call.1} parent=1 // pred_fallthru
      _
    // Predicated region
    $region42: #{tpu_custom_call.1} parent=1 // pred_check
      _
    $region43: #{tpu_custom_call.1} parent=1 // pred_check_branch
      %56 = sbr.rel (0) target = $region45
    $region44: #{tpu_custom_call.1} parent=1 // pred_region
      _
    $region45: #{tpu_custom_call.1} parent=1 // pred_fallthru
      _
    // Predicated region
    $region46: #{tpu_custom_call.1} parent=1 // pred_check
      _
    $region47: #{tpu_custom_call.1} parent=1 // pred_check_branch
      %58 = sbr.rel (0) target = $region49
    $region48: #{tpu_custom_call.1} parent=1 // pred_region
      _
    $region49: #{tpu_custom_call.1} parent=1 // pred_fallthru
      _
    // Predicated region
    $region50: #{tpu_custom_call.1} parent=1 // pred_check
      _
    $region51: #{tpu_custom_call.1} parent=1 // pred_check_branch
      %60 = sbr.rel (0) target = $region53
    $region52: #{tpu_custom_call.1} parent=1 // pred_region
      _
    $region53: #{tpu_custom_call.1} parent=1 // pred_fallthru
      _
    // Predicated region
    $region54: #{tpu_custom_call.1} parent=1 // pred_check
      _
    $region55: #{tpu_custom_call.1} parent=1 // pred_check_branch
      %62 = sbr.rel (0) target = $region57
    $region56: #{tpu_custom_call.1} parent=1 // pred_region
      _
    $region57: #{tpu_custom_call.1} parent=1 // pred_fallthru
      _
    // Predicated region
    $region58: #{tpu_custom_call.1} parent=1 // pred_check
      _
    $region59: #{tpu_custom_call.1} parent=1 // pred_check_branch
      %64 = sbr.rel (0) target = $region61
    $region60: #{tpu_custom_call.1} parent=1 // pred_region
      _
    $region61: #{tpu_custom_call.1} parent=1 // pred_fallthru
      _
    // Predicated region
    $region62: #{tpu_custom_call.1} parent=1 // pred_check
      _
    $region63: #{tpu_custom_call.1} parent=1 // pred_check_branch
      %66 = sbr.rel (0) target = $region65
    $region64: #{tpu_custom_call.1} parent=1 // pred_region
      _
    $region65: #{tpu_custom_call.1} parent=1 // pred_fallthru
      _
    // Predicated region
    $region66: #{tpu_custom_call.1} parent=1 // pred_check
      _
    $region67: #{tpu_custom_call.1} parent=1 // pred_check_branch
      %68 = sbr.rel (0) target = $region69
    $region68: #{tpu_custom_call.1} parent=1 // pred_region
      _
    $region69: #{tpu_custom_call.1} parent=1 // pred_fallthru
      _
    // Predicated region
    $region70: #{tpu_custom_call.1} parent=1 // pred_check
      _
    $region71: #{tpu_custom_call.1} parent=1 // pred_check_branch
      %70 = sbr.rel (0) target = $region73
    $region72: #{tpu_custom_call.1} parent=1 // pred_region
      %71 = dma.done [#allocation6], 128
    $region73: #{tpu_custom_call.1} parent=1 // pred_fallthru
      _
    %p73 = scmp.eq.s32.totalorder 0, 0
    // Predicated region
    $region74: #{tpu_custom_call.1} parent=1 // pred_check
      %p74 = pneg %p73
    $region75: #{tpu_custom_call.1} parent=1 // pred_check_branch
      %76 = sbr.rel (%p74) target = $region77
    $region76: #{tpu_custom_call.1} parent=1 // pred_region
      %vm77 = vcmask 130048
      %78 = vst.msk [vmem:[#allocation2] sm:$0xff] %vm77, 0.0
    $region77: #{tpu_custom_call.1} parent=1 // pred_fallthru
      _
    %v79 = vld [vmem:[#allocation2] sm:$0xff]
    %v80 = vld [vmem:[#allocation5] sm:$0xff]
    %v81 = vpack.c.bf16 %v80, %v80
    %v82 = vld [vmem:[%s2] sm:$0xf]
    %v83 = vld [vmem:[%s2 + $0x4] sm:$0xf]
    %v84 = vld [vmem:[%s2 + $0x8] sm:$0xf]
    %v85 = vld [vmem:[%s2 + $0xc] sm:$0xf]
    %v90 = vunpack.c.l.b16 %v82
    %v91 = vunpack.c.l.b16 %v83
    %v92 = vunpack.c.l.b16 %v84
    %v93 = vunpack.c.l.b16 %v85
    %v94 = vpack.c.b16 %v91, %v90
    %v95 = vpack.c.b16 %v93, %v92
    %vm98 = vcmask 261120
    %v100 = vsel %vm98, %v81, 0
    %102 = vmatprep.subr.bf16.mxu0 0
    %103 = vmatpush1.bf16.msra.mxu0 %v94
    %104 = vmatprep.subr.bf16.mxu0 0
    %105 = vmatpush1.bf16.msra.mxu0 %v95
    %106 = vmatprep.subr.bf16.mxu0 0
    %107 = vmatpush1.bf16.msra.mxu0 0
    %108 = vmatprep.subr.bf16.mxu0 0
    %109 = vmatpush1.bf16.msra.mxu0 0
    %110 = vmatprep.subr.bf16.mxu0 0
    %111 = vmatpush1.bf16.msra.mxu0 0
    %112 = vmatprep.subr.bf16.mxu0 0
    %113 = vmatpush1.bf16.msra.mxu0 0
    %114 = vmatprep.subr.bf16.mxu0 0
    %115 = vmatpush1.bf16.msra.mxu0 0
    %116 = vmatprep.subr.bf16.mxu0 0
    %117 = vmatpush1.bf16.msra.mxu0 0
    %118 = vmatprep.subr.bf16.mxu0 0
    %119 = vmatpush1.bf16.msra.mxu0 0
    %120 = vmatprep.subr.bf16.mxu0 0
    %121 = vmatpush1.bf16.msra.mxu0 0
    %122 = vmatprep.subr.bf16.mxu0 0
    %123 = vmatpush1.bf16.msra.mxu0 0
    %124 = vmatprep.subr.bf16.mxu0 0
    %125 = vmatpush1.bf16.msra.mxu0 0
    %126 = vmatprep.subr.bf16.mxu0 0
    %127 = vmatpush1.bf16.msra.mxu0 0
    %128 = vmatprep.subr.bf16.mxu0 0
    %129 = vmatpush1.bf16.msra.mxu0 0
    %130 = vmatprep.subr.bf16.mxu0 0
    %131 = vmatpush1.bf16.msra.mxu0 0
    %132 = vmatprep.subr.bf16.mxu0 0
    %133 = vmatpush1.bf16.msra.mxu0 0
    %134 = vmatprep.mubr.bf16.mxu0 0
    %135 = vmatmul.mubr.bf16.gmra.mrb[0].mxu0 %v100
    %v136 = vpop.f32.mrb[0].mxu0
    %v137 = vadd.f32 0.0, %v136
    %v138 = vpop.f32.mrb[0].mxu0
    %v139 = vpop.f32.mrb[0].mxu0
    %v140 = vpop.f32.mrb[0].mxu0
    %141 = vdwg.mxu0
    %v142 = vadd.f32 %v79, %v137
    %vm143 = vcmask 130048
    %144 = vst.msk [vmem:[#allocation2] sm:$0xff] %vm143, %v142
    // Predicated region
    $region78: #{tpu_custom_call.1} parent=1 // pred_check
      %p145 = pneg %p73
    $region79: #{tpu_custom_call.1} parent=1 // pred_check_branch
      %147 = sbr.rel (%p145) target = $region81
    $region80: #{tpu_custom_call.1} parent=1 // pred_region
      %v148 = vld [vmem:[#allocation2] sm:$0xff]
      %v149 = vld [vmem:[%s3] sm:$0x1]
      %v151 = vlaneseq
      %v152 = vshrl.u32 %v151, 7
      %v153 = vsub.s32 0, %v152
      %v154 = vrot.slane %v149, %v153
      %v156 = vadd.f32 %v148, %v154
      %v157 = vsel %vm143, %v156, 0.0
      %158 = vadd.xlane.f32.xlu0 %v157
      %v159 = vpop.xlane.xlu0 %158
      %v160 = vrcp.pop 16.0
      %v161 = vmul.f32 %v159, %v160
      %v162 = vsub.f32 %v156, %v161
      %v163 = vmul.f32 %v162, %v162
      %v164 = vsel %vm143, %v163, 0.0
      %165 = vadd.xlane.f32.xlu0 %v164
      %v166 = vpop.xlane.xlu0 %165
      %v167 = vmul.f32 %v166, %v160
      %v168 = vadd.f32 %v167, 1e-05
      %v169 = vrsqrt.pop %v168
      %v170 = vmul.f32 %v162, %v169
      %v171 = vld [vmem:[%s4] sm:$0x1]
      %v173 = vlaneseq
      %v174 = vshrl.u32 %v173, 7
      %v175 = vsub.s32 0, %v174
      %v176 = vrot.slane %v171, %v175
      %v178 = vmul.f32 %v170, %v176
      %v179 = vld [vmem:[%s5] sm:$0x1]
      %v181 = vlaneseq
      %v182 = vshrl.u32 %v181, 7
      %v183 = vsub.s32 0, %v182
      %v184 = vrot.slane %v179, %v183
      %v186 = vadd.f32 %v178, %v184
      %v187 = vtanh.pop %v186
      %v188 = vld [vmem:[%s1] sm:$0xff]
      %v189 = vpack.c.bf16 %v188, %v188
      %v190 = vpack.c.bf16 %v187, %v187
      %v191 = vld [vmem:[%s6] sm:$0xf]
      %v192 = vld [vmem:[%s6 + $0x4] sm:$0xf]
      %v193 = vld [vmem:[%s7] sm:$0x3]
      %vm194 = vcmask 31744
      %v196 = vsel %vm194, %v189, 0
      %vm198 = vcmask 1041408
      %v200 = vsel %vm198, %v193, 0
      %202 = vmatprep.subr.bf16.mxu0 0
      %203 = vmatpush1.bf16.msra.mxu0 %v200
      %204 = vmatprep.subr.bf16.mxu0 0
      %205 = vmatpush1.bf16.msra.mxu0 0
      %206 = vmatprep.subr.bf16.mxu0 0
      %207 = vmatpush1.bf16.msra.mxu0 0
      %208 = vmatprep.subr.bf16.mxu0 0
      %209 = vmatpush1.bf16.msra.mxu0 0
      %210 = vmatprep.subr.bf16.mxu0 0
      %211 = vmatpush1.bf16.msra.mxu0 0
      %212 = vmatprep.subr.bf16.mxu0 0
      %213 = vmatpush1.bf16.msra.mxu0 0
      %214 = vmatprep.subr.bf16.mxu0 0
      %215 = vmatpush1.bf16.msra.mxu0 0
      %216 = vmatprep.subr.bf16.mxu0 0
      %217 = vmatpush1.bf16.msra.mxu0 0
      %218 = vmatprep.subr.bf16.mxu0 0
      %219 = vmatpush1.bf16.msra.mxu0 0
      %220 = vmatprep.subr.bf16.mxu0 0
      %221 = vmatpush1.bf16.msra.mxu0 0
      %222 = vmatprep.subr.bf16.mxu0 0
      %223 = vmatpush1.bf16.msra.mxu0 0
      %224 = vmatprep.subr.bf16.mxu0 0
      %225 = vmatpush1.bf16.msra.mxu0 0
      %226 = vmatprep.subr.bf16.mxu0 0
      %227 = vmatpush1.bf16.msra.mxu0 0
      %228 = vmatprep.subr.bf16.mxu0 0
      %229 = vmatpush1.bf16.msra.mxu0 0
      %230 = vmatprep.subr.bf16.mxu0 0
      %231 = vmatpush1.bf16.msra.mxu0 0
      %232 = vmatprep.subr.bf16.mxu0 0
      %233 = vmatpush1.bf16.msra.mxu0 0
      %234 = vmatprep.mubr.bf16.mxu0 0
      %235 = vmatmul.mubr.bf16.gmra.mrb[0].mxu0 %v196
      %v236 = vpop.f32.mrb[0].mxu0
      %v237 = vadd.f32 0.0, %v236
      %v238 = vpop.f32.mrb[0].mxu0
      %v239 = vpop.f32.mrb[0].mxu0
      %v240 = vpop.f32.mrb[0].mxu0
      %241 = vdwg.mxu0
      %v244 = vunpack.c.l.b16 %v191
      %v245 = vunpack.c.l.b16 %v192
      %v246 = vpack.c.b16 %v245, %v244
      %v249 = vsel %vm143, %v190, 0
      %251 = vmatprep.subr.bf16.mxu0 0
      %252 = vmatpush1.bf16.msra.mxu0 %v246
      %253 = vmatprep.subr.bf16.mxu0 0
      %254 = vmatpush1.bf16.msra.mxu0 0
      %255 = vmatprep.subr.bf16.mxu0 0
      %256 = vmatpush1.bf16.msra.mxu0 0
      %257 = vmatprep.subr.bf16.mxu0 0
      %258 = vmatpush1.bf16.msra.mxu0 0
      %259 = vmatprep.subr.bf16.mxu0 0
      %260 = vmatpush1.bf16.msra.mxu0 0
      %261 = vmatprep.subr.bf16.mxu0 0
      %262 = vmatpush1.bf16.msra.mxu0 0
      %263 = vmatprep.subr.bf16.mxu0 0
      %264 = vmatpush1.bf16.msra.mxu0 0
      %265 = vmatprep.subr.bf16.mxu0 0
      %266 = vmatpush1.bf16.msra.mxu0 0
      %267 = vmatprep.subr.bf16.mxu0 0
      %268 = vmatpush1.bf16.msra.mxu0 0
      %269 = vmatprep.subr.bf16.mxu0 0
      %270 = vmatpush1.bf16.msra.mxu0 0
      %271 = vmatprep.subr.bf16.mxu0 0
      %272 = vmatpush1.bf16.msra.mxu0 0
      %273 = vmatprep.subr.bf16.mxu0 0
      %274 = vmatpush1.bf16.msra.mxu0 0
      %275 = vmatprep.subr.bf16.mxu0 0
      %276 = vmatpush1.bf16.msra.mxu0 0
      %277 = vmatprep.subr.bf16.mxu0 0
      %278 = vmatpush1.bf16.msra.mxu0 0
      %279 = vmatprep.subr.bf16.mxu0 0
      %280 = vmatpush1.bf16.msra.mxu0 0
      %281 = vmatprep.subr.bf16.mxu0 0
      %282 = vmatpush1.bf16.msra.mxu0 0
      %283 = vmatprep.mubr.bf16.mxu0 0
      %284 = vmatmul.mubr.bf16.gmra.mrb[0].mxu0 %v249
      %v285 = vpop.f32.mrb[0].mxu0
      %v286 = vadd.f32 %v237, %v285
      %v287 = vpop.f32.mrb[0].mxu0
      %v288 = vpop.f32.mrb[0].mxu0
      %v289 = vpop.f32.mrb[0].mxu0
      %290 = vdwg.mxu0
      %v291 = vld [vmem:[%s8] sm:$0x1]
      %v293 = vlaneseq
      %v294 = vshrl.u32 %v293, 7
      %v295 = vsub.s32 0, %v294
      %v296 = vrot.slane %v291, %v295
      %v298 = vadd.f32 %v286, %v296
      %v299 = vmax.f32 %v298, 0.0
      %v300 = vpack.c.bf16 %v299, %v299
      %v301 = vld [vmem:[%s9] sm:$0xf]
      %v302 = vld [vmem:[%s9 + $0x4] sm:$0xf]
      %v303 = vld [vmem:[%s9 + $0x8] sm:$0xf]
      %v304 = vld [vmem:[%s9 + $0xc] sm:$0xf]
      %v305 = vld [vmem:[%s10] sm:$0x1]
      %v307 = vlaneseq
      %v308 = vshrl.u32 %v307, 7
      %v309 = vsub.s32 0, %v308
      %v310 = vrot.slane %v305, %v309
      %v316 = vunpack.c.l.b16 %v301
      %v317 = vunpack.c.l.b16 %v302
      %v318 = vunpack.c.l.b16 %v303
      %v319 = vunpack.c.l.b16 %v304
      %v320 = vpack.c.b16 %v317, %v316
      %v321 = vpack.c.b16 %v319, %v318
      %v325 = vsel %vm98, %v300, 0
      %327 = vmatprep.subr.bf16.mxu0 0
      %328 = vmatpush1.bf16.msra.mxu0 %v320
      %329 = vmatprep.subr.bf16.mxu0 0
      %330 = vmatpush1.bf16.msra.mxu0 %v321
      %331 = vmatprep.subr.bf16.mxu0 0
      %332 = vmatpush1.bf16.msra.mxu0 0
      %333 = vmatprep.subr.bf16.mxu0 0
      %334 = vmatpush1.bf16.msra.mxu0 0
      %335 = vmatprep.subr.bf16.mxu0 0
      %336 = vmatpush1.bf16.msra.mxu0 0
      %337 = vmatprep.subr.bf16.mxu0 0
      %338 = vmatpush1.bf16.msra.mxu0 0
      %339 = vmatprep.subr.bf16.mxu0 0
      %340 = vmatpush1.bf16.msra.mxu0 0
      %341 = vmatprep.subr.bf16.mxu0 0
      %342 = vmatpush1.bf16.msra.mxu0 0
      %343 = vmatprep.subr.bf16.mxu0 0
      %344 = vmatpush1.bf16.msra.mxu0 0
      %345 = vmatprep.subr.bf16.mxu0 0
      %346 = vmatpush1.bf16.msra.mxu0 0
      %347 = vmatprep.subr.bf16.mxu0 0
      %348 = vmatpush1.bf16.msra.mxu0 0
      %349 = vmatprep.subr.bf16.mxu0 0
      %350 = vmatpush1.bf16.msra.mxu0 0
      %351 = vmatprep.subr.bf16.mxu0 0
      %352 = vmatpush1.bf16.msra.mxu0 0
      %353 = vmatprep.subr.bf16.mxu0 0
      %354 = vmatpush1.bf16.msra.mxu0 0
      %355 = vmatprep.subr.bf16.mxu0 0
      %356 = vmatpush1.bf16.msra.mxu0 0
      %357 = vmatprep.subr.bf16.mxu0 0
      %358 = vmatpush1.bf16.msra.mxu0 0
      %359 = vmatprep.mubr.bf16.mxu0 0
      %360 = vmatmul.mubr.bf16.gmra.mrb[0].mxu0 %v325
      %v361 = vpop.f32.mrb[0].mxu0
      %v362 = vadd.f32 %v310, %v361
      %v363 = vpop.f32.mrb[0].mxu0
      %v364 = vpop.f32.mrb[0].mxu0
      %v365 = vpop.f32.mrb[0].mxu0
      %366 = vdwg.mxu0
      %v367 = vmax.f32 %v362, 0.0
      %v368 = vld [vmem:[%s11] sm:$0xf]
      %v369 = vld [vmem:[%s11 + $0x4] sm:$0xf]
      %v370 = vld [vmem:[%s11 + $0x8] sm:$0xf]
      %v371 = vld [vmem:[%s11 + $0xc] sm:$0xf]
      %v372 = vld [vmem:[%s12] sm:$0x1]
      %v374 = vlaneseq
      %v375 = vshrl.u32 %v374, 7
      %v376 = vsub.s32 0, %v375
      %v377 = vrot.slane %v372, %v376
      %380 = vrot.lane.b32.xlu0 %v300, 96
      %v381 = vpop.permute.xlu0 %380
      %v386 = vunpack.c.l.b16 %v368
      %v387 = vunpack.c.l.b16 %v369
      %v388 = vunpack.c.l.b16 %v370
      %v389 = vunpack.c.l.b16 %v371
      %v390 = vpack.c.b16 %v387, %v386
      %v391 = vpack.c.b16 %v389, %v388
      %v395 = vsel %vm98, %v381, 0
      %397 = vmatprep.subr.bf16.mxu0 0
      %398 = vmatpush1.bf16.msra.mxu0 %v390
      %399 = vmatprep.subr.bf16.mxu0 0
      %400 = vmatpush1.bf16.msra.mxu0 %v391
      %401 = vmatprep.subr.bf16.mxu0 0
      %402 = vmatpush1.bf16.msra.mxu0 0
      %403 = vmatprep.subr.bf16.mxu0 0
      %404 = vmatpush1.bf16.msra.mxu0 0
      %405 = vmatprep.subr.bf16.mxu0 0
      %406 = vmatpush1.bf16.msra.mxu0 0
      %407 = vmatprep.subr.bf16.mxu0 0
      %408 = vmatpush1.bf16.msra.mxu0 0
      %409 = vmatprep.subr.bf16.mxu0 0
      %410 = vmatpush1.bf16.msra.mxu0 0
      %411 = vmatprep.subr.bf16.mxu0 0
      %412 = vmatpush1.bf16.msra.mxu0 0
      %413 = vmatprep.subr.bf16.mxu0 0
      %414 = vmatpush1.bf16.msra.mxu0 0
      %415 = vmatprep.subr.bf16.mxu0 0
      %416 = vmatpush1.bf16.msra.mxu0 0
      %417 = vmatprep.subr.bf16.mxu0 0
      %418 = vmatpush1.bf16.msra.mxu0 0
      %419 = vmatprep.subr.bf16.mxu0 0
      %420 = vmatpush1.bf16.msra.mxu0 0
      %421 = vmatprep.subr.bf16.mxu0 0
      %422 = vmatpush1.bf16.msra.mxu0 0
      %423 = vmatprep.subr.bf16.mxu0 0
      %424 = vmatpush1.bf16.msra.mxu0 0
      %425 = vmatprep.subr.bf16.mxu0 0
      %426 = vmatpush1.bf16.msra.mxu0 0
      %427 = vmatprep.subr.bf16.mxu0 0
      %428 = vmatpush1.bf16.msra.mxu0 0
      %429 = vmatprep.mubr.bf16.mxu0 0
      %430 = vmatmul.mubr.bf16.gmra.mrb[0].mxu0 %v395
      %v431 = vpop.f32.mrb[0].mxu0
      %v432 = vadd.f32 %v377, %v431
      %v433 = vpop.f32.mrb[0].mxu0
      %v434 = vpop.f32.mrb[0].mxu0
      %v435 = vpop.f32.mrb[0].mxu0
      %436 = vdwg.mxu0
      %v437 = vmax.f32 %v432, 0.0
      %v438 = vld [vmem:[%s13] sm:$0x1]
      %v440 = vlaneseq
      %v441 = vshrl.u32 %v440, 7
      %v442 = vsub.s32 0, %v441
      %v443 = vrot.slane %v438, %v442
      %v445 = vmul.f32 %v367, %v443
      %v446 = vsel %vm98, %v445, 0.0
      %447 = vadd.xlane.f32.xlu0 %v446
      %v448 = vpop.xlane.xlu0 %447
      %v449 = vld [vmem:[#allocation3] sm:$0x1]
      %v451 = vlaneseq
      %v452 = vshrl.u32 %v451, 7
      %v453 = vsub.s32 0, %v452
      %v454 = vrot.slane %v449, %v453
      %v456 = vadd.f32 %v448, %v454
      %vm457 = vcmask 7168
      %458 = vst.msk [vmem:[%s17] sm:$0xff] %vm457, %v456
      %v459 = vld [vmem:[%s15] sm:$0x1]
      %v461 = vlaneseq
      %v462 = vshrl.u32 %v461, 7
      %v463 = vsub.s32 0, %v462
      %v464 = vrot.slane %v459, %v463
      %v466 = vmul.f32 %v437, %v464
      %v467 = vsel %vm98, %v466, 0.0
      %468 = vadd.xlane.f32.xlu0 %v467
      %v469 = vpop.xlane.xlu0 %468
      %v470 = vld [vmem:[#allocation4] sm:$0x1]
      %v472 = vlaneseq
      %v473 = vshrl.u32 %v472, 7
      %v474 = vsub.s32 0, %v473
      %v475 = vrot.slane %v470, %v474
      %v477 = vadd.f32 %v469, %v475
      %479 = vrot.lane.b32.xlu0 %v477, 1
      %v480 = vpop.permute.xlu0 %479
      %vm482 = vcmask 15368
      %483 = vst.msk [vmem:[%s17] sm:$0xff] %vm482, %v480
    $region81: #{tpu_custom_call.1} parent=1 // pred_fallthru
      _
    // Predicated region
    $region82: #{tpu_custom_call.1} parent=1 // pred_check
      _
    $region83: #{tpu_custom_call.1} parent=1 // pred_check_branch
      %485 = sbr.rel (0) target = $region85
    $region84: #{tpu_custom_call.1} parent=1 // pred_region
      _
    $region85: #{tpu_custom_call.1} parent=1 // pred_fallthru
      _
    // Predicated region
    $region86: #{tpu_custom_call.1} parent=1 // pred_check
      _
    $region87: #{tpu_custom_call.1} parent=1 // pred_check_branch
      %487 = sbr.rel (0) target = $region89
    $region88: #{tpu_custom_call.1} parent=1 // pred_region
      _
    $region89: #{tpu_custom_call.1} parent=1 // pred_fallthru
      _
    %488 = vsyncpa [#allocation6], 1

// kernel: tpu_custom_call.1
$region0: #{tpu_custom_call.1}
  #allocation0 [shape = 'u32[]', space=smem, size = 0x4, offset = 0x4, fixed_abs, tag = 'smem constant byte address 0x4 - core index']
  #allocation1 [shape = 'u32[144,128]{1,0:T(1,128)}', space=vmem, size = 0x12000, scoped, tag = 'internal scratch']
  #allocation2 [shape = 'f32[8,16]{1,0:T(8,128)}', space=vmem, size = 0x1000, scoped, tag = 'scratch operand']
  #allocation3 [shape = 'f32[1,1]{1,0:T(1,128)S(1)}', space=vmem, size = 0x200, scoped, tag = 'scoped memory for tpu_custom_call.1']
  #allocation4 [shape = 'f32[1,1]{1,0:T(1,128)S(1)}', space=vmem, size = 0x200, scoped, tag = 'scoped memory for tpu_custom_call.1']
  %s0 = inlined_call_operand.hbm [shape: f32[8,32], index: 0, kind: input, shape index: {}]
  %s1 = inlined_call_operand.vmem [shape: f32[8,4], index: 1, kind: input, shape index: {}]
  %s2 = inlined_call_operand.vmem [shape: bf16[32,16], index: 2, kind: input, shape index: {}]
  %s3 = inlined_call_operand.vmem [shape: f32[1,16], index: 3, kind: input, shape index: {}]
  %s4 = inlined_call_operand.vmem [shape: f32[1,16], index: 4, kind: input, shape index: {}]
  %s5 = inlined_call_operand.vmem [shape: f32[1,16], index: 5, kind: input, shape index: {}]
  %s6 = inlined_call_operand.vmem [shape: bf16[16,64], index: 6, kind: input, shape index: {}]
  %s7 = inlined_call_operand.vmem [shape: bf16[4,64], index: 7, kind: input, shape index: {}]
  %s8 = inlined_call_operand.vmem [shape: f32[1,64], index: 8, kind: input, shape index: {}]
  %s9 = inlined_call_operand.vmem [shape: bf16[32,32], index: 9, kind: input, shape index: {}]
  %s10 = inlined_call_operand.vmem [shape: f32[1,32], index: 10, kind: input, shape index: {}]
  %s11 = inlined_call_operand.vmem [shape: bf16[32,32], index: 11, kind: input, shape index: {}]
  %s12 = inlined_call_operand.vmem [shape: f32[1,32], index: 12, kind: input, shape index: {}]
  %s13 = inlined_call_operand.vmem [shape: f32[1,32], index: 13, kind: input, shape index: {}]
  %s14 = inlined_call_operand.<no memory space> [shape: f32[1,1], index: 14, kind: input, shape index: {}]
  %s15 = inlined_call_operand.vmem [shape: f32[1,32], index: 15, kind: input, shape index: {}]
  %s16 = inlined_call_operand.<no memory space> [shape: f32[1,1], index: 16, kind: input, shape index: {}]
  %s17 = inlined_call_operand.vmem [shape: f32[8,2], index: 17, kind: output, shape index: {}]
  %s18 = sld [smem:[#allocation0]]
  $region90: #{tpu_custom_call.1} parent=0
    _
  %s20 = ssub.s32 1, %s18
  %s21 = scalar_select 0, %s20, %s18
  %v22 = vstv %s14
  %23 = vst [vmem:[#allocation3] sm:$0x1] %v22
  %v24 = vstv %s16
  %25 = vst [vmem:[#allocation4] sm:$0x1] %v24
  $region1: #{tpu_custom_call.1} parent=0
    #allocation5 [shape = 'u8[4096]{0}', space=vmem, size = 0x1000, scoped, tag = 'input window, operand 0, single buffered']
    #allocation6 [shape = 's32[1]{0}', space=sflag, size = 0x4, scoped, tag = 'scoped memory for tpu_custom_call.1']
    %26 = vsyncpa [#allocation6], 0
    // Predicated region
    $region2: #{tpu_custom_call.1} parent=1 // pred_check
      _
    $region3: #{tpu_custom_call.1} parent=1 // pred_check_branch
      %28 = sbr.rel (0) target = $region5
    $region4: #{tpu_custom_call.1} parent=1 // pred_region
      %s30 = ssub.s32 128, 128
      %31 = vsyncadd [#allocation6], %s30
      %s33 = sshll.u32 [#allocation5], 4
      %s34 = int_to_ptr.vmem [resolvable:$true] %s33
      %36 = dma.hbm_to_vmem [thread:$0]  %s0, 128, %s34, [#allocation6]
    $region5: #{tpu_custom_call.1} parent=1 // pred_fallthru
      _
    // Predicated region
    $region6: #{tpu_custom_call.1} parent=1 // pred_check
      _
    $region7: #{tpu_custom_call.1} parent=1 // pred_check_branch
      %38 = sbr.rel (0) target = $region9
    $region8: #{tpu_custom_call.1} parent=1 // pred_region
      _
    $region9: #{tpu_custom_call.1} parent=1 // pred_fallthru
      _
    // Predicated region
    $region10: #{tpu_custom_call.1} parent=1 // pred_check
      _
    $region11: #{tpu_custom_call.1} parent=1 // pred_check_branch
      %40 = sbr.rel (0) target = $region13
    $region12: #{tpu_custom_call.1} parent=1 // pred_region
      _
    $region13: #{tpu_custom_call.1} parent=1 // pred_fallthru
      _
    // Predicated region
    $region14: #{tpu_custom_call.1} parent=1 // pred_check
      _
    $region15: #{tpu_custom_call.1} parent=1 // pred_check_branch
      %42 = sbr.rel (0) target = $region17
    $region16: #{tpu_custom_call.1} parent=1 // pred_region
      _
    $region17: #{tpu_custom_call.1} parent=1 // pred_fallthru
      _
    // Predicated region
    $region18: #{tpu_custom_call.1} parent=1 // pred_check
      _
    $region19: #{tpu_custom_call.1} parent=1 // pred_check_branch
      %44 = sbr.rel (0) target = $region21
    $region20: #{tpu_custom_call.1} parent=1 // pred_region
      _
    $region21: #{tpu_custom_call.1} parent=1 // pred_fallthru
      _
    // Predicated region
    $region22: #{tpu_custom_call.1} parent=1 // pred_check
      _
    $region23: #{tpu_custom_call.1} parent=1 // pred_check_branch
      %46 = sbr.rel (0) target = $region25
    $region24: #{tpu_custom_call.1} parent=1 // pred_region
      _
    $region25: #{tpu_custom_call.1} parent=1 // pred_fallthru
      _
    // Predicated region
    $region26: #{tpu_custom_call.1} parent=1 // pred_check
      _
    $region27: #{tpu_custom_call.1} parent=1 // pred_check_branch
      %48 = sbr.rel (0) target = $region29
    $region28: #{tpu_custom_call.1} parent=1 // pred_region
      _
    $region29: #{tpu_custom_call.1} parent=1 // pred_fallthru
      _
    // Predicated region
    $region30: #{tpu_custom_call.1} parent=1 // pred_check
      _
    $region31: #{tpu_custom_call.1} parent=1 // pred_check_branch
      %50 = sbr.rel (0) target = $region33
    $region32: #{tpu_custom_call.1} parent=1 // pred_region
      _
    $region33: #{tpu_custom_call.1} parent=1 // pred_fallthru
      _
    // Predicated region
    $region34: #{tpu_custom_call.1} parent=1 // pred_check
      _
    $region35: #{tpu_custom_call.1} parent=1 // pred_check_branch
      %52 = sbr.rel (0) target = $region37
    $region36: #{tpu_custom_call.1} parent=1 // pred_region
      _
    $region37: #{tpu_custom_call.1} parent=1 // pred_fallthru
      _
    // Predicated region
    $region38: #{tpu_custom_call.1} parent=1 // pred_check
      _
    $region39: #{tpu_custom_call.1} parent=1 // pred_check_branch
      %54 = sbr.rel (0) target = $region41
    $region40: #{tpu_custom_call.1} parent=1 // pred_region
      _
    $region41: #{tpu_custom_call.1} parent=1 // pred_fallthru
      _
    // Predicated region
    $region42: #{tpu_custom_call.1} parent=1 // pred_check
      _
    $region43: #{tpu_custom_call.1} parent=1 // pred_check_branch
      %56 = sbr.rel (0) target = $region45
    $region44: #{tpu_custom_call.1} parent=1 // pred_region
      _
    $region45: #{tpu_custom_call.1} parent=1 // pred_fallthru
      _
    // Predicated region
    $region46: #{tpu_custom_call.1} parent=1 // pred_check
      _
    $region47: #{tpu_custom_call.1} parent=1 // pred_check_branch
      %58 = sbr.rel (0) target = $region49
    $region48: #{tpu_custom_call.1} parent=1 // pred_region
      _
    $region49: #{tpu_custom_call.1} parent=1 // pred_fallthru
      _
    // Predicated region
    $region50: #{tpu_custom_call.1} parent=1 // pred_check
      _
    $region51: #{tpu_custom_call.1} parent=1 // pred_check_branch
      %60 = sbr.rel (0) target = $region53
    $region52: #{tpu_custom_call.1} parent=1 // pred_region
      _
    $region53: #{tpu_custom_call.1} parent=1 // pred_fallthru
      _
    // Predicated region
    $region54: #{tpu_custom_call.1} parent=1 // pred_check
      _
    $region55: #{tpu_custom_call.1} parent=1 // pred_check_branch
      %62 = sbr.rel (0) target = $region57
    $region56: #{tpu_custom_call.1} parent=1 // pred_region
      _
    $region57: #{tpu_custom_call.1} parent=1 // pred_fallthru
      _
    // Predicated region
    $region58: #{tpu_custom_call.1} parent=1 // pred_check
      _
    $region59: #{tpu_custom_call.1} parent=1 // pred_check_branch
      %64 = sbr.rel (0) target = $region61
    $region60: #{tpu_custom_call.1} parent=1 // pred_region
      _
    $region61: #{tpu_custom_call.1} parent=1 // pred_fallthru
      _
    // Predicated region
    $region62: #{tpu_custom_call.1} parent=1 // pred_check
      _
    $region63: #{tpu_custom_call.1} parent=1 // pred_check_branch
      %66 = sbr.rel (0) target = $region65
    $region64: #{tpu_custom_call.1} parent=1 // pred_region
      _
    $region65: #{tpu_custom_call.1} parent=1 // pred_fallthru
      _
    // Predicated region
    $region66: #{tpu_custom_call.1} parent=1 // pred_check
      _
    $region67: #{tpu_custom_call.1} parent=1 // pred_check_branch
      %68 = sbr.rel (0) target = $region69
    $region68: #{tpu_custom_call.1} parent=1 // pred_region
      _
    $region69: #{tpu_custom_call.1} parent=1 // pred_fallthru
      _
    // Predicated region
    $region70: #{tpu_custom_call.1} parent=1 // pred_check
      _
    $region71: #{tpu_custom_call.1} parent=1 // pred_check_branch
      %70 = sbr.rel (0) target = $region73
    $region72: #{tpu_custom_call.1} parent=1 // pred_region
      %71 = dma.done [#allocation6], 128
    $region73: #{tpu_custom_call.1} parent=1 // pred_fallthru
      _
    %p73 = scmp.eq.s32.totalorder 0, 0
    // Predicated region
    $region74: #{tpu_custom_call.1} parent=1 // pred_check
      %p74 = pneg %p73
    $region75: #{tpu_custom_call.1} parent=1 // pred_check_branch
      %76 = sbr.rel (%p74) target = $region77
    $region76: #{tpu_custom_call.1} parent=1 // pred_region
      %vm77 = vcmask 130048
      %78 = vst.msk [vmem:[#allocation2] sm:$0xff] %vm77, 0.0
    $region77: #{tpu_custom_call.1} parent=1 // pred_fallthru
      _
    %v79 = vld [vmem:[#allocation2] sm:$0xff]
    %v80 = vld [vmem:[#allocation5] sm:$0xff]
    %v81 = vpack.c.bf16 %v80, %v80
    %v82 = vld [vmem:[%s2] sm:$0xf]
    %v83 = vld [vmem:[%s2 + $0x4] sm:$0xf]
    %v84 = vld [vmem:[%s2 + $0x8] sm:$0xf]
    %v85 = vld [vmem:[%s2 + $0xc] sm:$0xf]
    %v90 = vunpack.c.l.b16 %v82
    %v91 = vunpack.c.l.b16 %v83
    %v92 = vunpack.c.l.b16 %v84
    %v93 = vunpack.c.l.b16 %v85
    %v94 = vpack.c.b16 %v91, %v90
    %v95 = vpack.c.b16 %v93, %v92
    %vm98 = vcmask 261120
    %v100 = vsel %vm98, %v81, 0
    %102 = vmatprep.subr.bf16.mxu0 0
    %103 = vmatpush1.bf16.msra.mxu0 %v94
    %104 = vmatprep.subr.bf16.mxu0 0
    %105 = vmatpush1.bf16.msra.mxu0 %v95
    %106 = vmatprep.subr.bf16.mxu0 0
    %107 = vmatpush1.bf16.msra.mxu0 0
    %108 = vmatprep.subr.bf16.mxu0 0
    %109 = vmatpush1.bf16.msra.mxu0 0
    %110 = vmatprep.subr.bf16.mxu0 0
    %111 = vmatpush1.bf16.msra.mxu0 0
    %112 = vmatprep.subr.bf16.mxu0 0
    %113 = vmatpush1.bf16.msra.mxu0 0
    %114 = vmatprep.subr.bf16.mxu0 0
    %115 = vmatpush1.bf16.msra.mxu0 0
    %116 = vmatprep.subr.bf16.mxu0 0
    %117 = vmatpush1.bf16.msra.mxu0 0
    %118 = vmatprep.subr.bf16.mxu0 0
    %119 = vmatpush1.bf16.msra.mxu0 0
    %120 = vmatprep.subr.bf16.mxu0 0
    %121 = vmatpush1.bf16.msra.mxu0 0
    %122 = vmatprep.subr.bf16.mxu0 0
    %123 = vmatpush1.bf16.msra.mxu0 0
    %124 = vmatprep.subr.bf16.mxu0 0
    %125 = vmatpush1.bf16.msra.mxu0 0
    %126 = vmatprep.subr.bf16.mxu0 0
    %127 = vmatpush1.bf16.msra.mxu0 0
    %128 = vmatprep.subr.bf16.mxu0 0
    %129 = vmatpush1.bf16.msra.mxu0 0
    %130 = vmatprep.subr.bf16.mxu0 0
    %131 = vmatpush1.bf16.msra.mxu0 0
    %132 = vmatprep.subr.bf16.mxu0 0
    %133 = vmatpush1.bf16.msra.mxu0 0
    %134 = vmatprep.mubr.bf16.mxu0 0
    %135 = vmatmul.mubr.bf16.gmra.mrb[0].mxu0 %v100
    %v136 = vpop.f32.mrb[0].mxu0
    %v137 = vadd.f32 0.0, %v136
    %v138 = vpop.f32.mrb[0].mxu0
    %v139 = vpop.f32.mrb[0].mxu0
    %v140 = vpop.f32.mrb[0].mxu0
    %141 = vdwg.mxu0
    %v142 = vadd.f32 %v79, %v137
    %vm143 = vcmask 130048
    %144 = vst.msk [vmem:[#allocation2] sm:$0xff] %vm143, %v142
    // Predicated region
    $region78: #{tpu_custom_call.1} parent=1 // pred_check
      %p145 = pneg %p73
    $region79: #{tpu_custom_call.1} parent=1 // pred_check_branch
      %147 = sbr.rel (%p145) target = $region81
    $region80: #{tpu_custom_call.1} parent=1 // pred_region
      %v148 = vld [vmem:[#allocation2] sm:$0xff]
      %v149 = vld [vmem:[%s3] sm:$0x1]
      %v151 = vlaneseq
      %v152 = vshrl.u32 %v151, 7
      %v153 = vsub.s32 0, %v152
      %v154 = vrot.slane %v149, %v153
      %v156 = vadd.f32 %v148, %v154
      %v157 = vsel %vm143, %v156, 0.0
      %158 = vadd.xlane.f32.xlu0 %v157
      %v159 = vpop.xlane.xlu0 %158
      %v160 = vrcp.pop 16.0
      %v161 = vmul.f32 %v159, %v160
      %v162 = vsub.f32 %v156, %v161
      %v163 = vmul.f32 %v162, %v162
      %v164 = vsel %vm143, %v163, 0.0
      %165 = vadd.xlane.f32.xlu0 %v164
      %v166 = vpop.xlane.xlu0 %165
      %v167 = vmul.f32 %v166, %v160
      %v168 = vadd.f32 %v167, 1e-05
      %v169 = vrsqrt.pop %v168
      %v170 = vmul.f32 %v162, %v169
      %v171 = vld [vmem:[%s4] sm:$0x1]
      %v173 = vlaneseq
      %v174 = vshrl.u32 %v173, 7
      %v175 = vsub.s32 0, %v174
      %v176 = vrot.slane %v171, %v175
      %v178 = vmul.f32 %v170, %v176
      %v179 = vld [vmem:[%s5] sm:$0x1]
      %v181 = vlaneseq
      %v182 = vshrl.u32 %v181, 7
      %v183 = vsub.s32 0, %v182
      %v184 = vrot.slane %v179, %v183
      %v186 = vadd.f32 %v178, %v184
      %v187 = vtanh.pop %v186
      %v188 = vld [vmem:[%s1] sm:$0xff]
      %v189 = vpack.c.bf16 %v188, %v188
      %v190 = vpack.c.bf16 %v187, %v187
      %v191 = vld [vmem:[%s6] sm:$0xf]
      %v192 = vld [vmem:[%s6 + $0x4] sm:$0xf]
      %v193 = vld [vmem:[%s7] sm:$0x3]
      %vm194 = vcmask 31744
      %v196 = vsel %vm194, %v189, 0
      %vm198 = vcmask 1041408
      %v200 = vsel %vm198, %v193, 0
      %202 = vmatprep.subr.bf16.mxu0 0
      %203 = vmatpush1.bf16.msra.mxu0 %v200
      %204 = vmatprep.subr.bf16.mxu0 0
      %205 = vmatpush1.bf16.msra.mxu0 0
      %206 = vmatprep.subr.bf16.mxu0 0
      %207 = vmatpush1.bf16.msra.mxu0 0
      %208 = vmatprep.subr.bf16.mxu0 0
      %209 = vmatpush1.bf16.msra.mxu0 0
      %210 = vmatprep.subr.bf16.mxu0 0
      %211 = vmatpush1.bf16.msra.mxu0 0
      %212 = vmatprep.subr.bf16.mxu0 0
      %213 = vmatpush1.bf16.msra.mxu0 0
      %214 = vmatprep.subr.bf16.mxu0 0
      %215 = vmatpush1.bf16.msra.mxu0 0
      %216 = vmatprep.subr.bf16.mxu0 0
      %217 = vmatpush1.bf16.msra.mxu0 0
      %218 = vmatprep.subr.bf16.mxu0 0
      %219 = vmatpush1.bf16.msra.mxu0 0
      %220 = vmatprep.subr.bf16.mxu0 0
      %221 = vmatpush1.bf16.msra.mxu0 0
      %222 = vmatprep.subr.bf16.mxu0 0
      %223 = vmatpush1.bf16.msra.mxu0 0
      %224 = vmatprep.subr.bf16.mxu0 0
      %225 = vmatpush1.bf16.msra.mxu0 0
      %226 = vmatprep.subr.bf16.mxu0 0
      %227 = vmatpush1.bf16.msra.mxu0 0
      %228 = vmatprep.subr.bf16.mxu0 0
      %229 = vmatpush1.bf16.msra.mxu0 0
      %230 = vmatprep.subr.bf16.mxu0 0
      %231 = vmatpush1.bf16.msra.mxu0 0
      %232 = vmatprep.subr.bf16.mxu0 0
      %233 = vmatpush1.bf16.msra.mxu0 0
      %234 = vmatprep.mubr.bf16.mxu0 0
      %235 = vmatmul.mubr.bf16.gmra.mrb[0].mxu0 %v196
      %v236 = vpop.f32.mrb[0].mxu0
      %v237 = vadd.f32 0.0, %v236
      %v238 = vpop.f32.mrb[0].mxu0
      %v239 = vpop.f32.mrb[0].mxu0
      %v240 = vpop.f32.mrb[0].mxu0
      %241 = vdwg.mxu0
      %v244 = vunpack.c.l.b16 %v191
      %v245 = vunpack.c.l.b16 %v192
      %v246 = vpack.c.b16 %v245, %v244
      %v249 = vsel %vm143, %v190, 0
      %251 = vmatprep.subr.bf16.mxu0 0
      %252 = vmatpush1.bf16.msra.mxu0 %v246
      %253 = vmatprep.subr.bf16.mxu0 0
      %254 = vmatpush1.bf16.msra.mxu0 0
      %255 = vmatprep.subr.bf16.mxu0 0
      %256 = vmatpush1.bf16.msra.mxu0 0
      %257 = vmatprep.subr.bf16.mxu0 0
      %258 = vmatpush1.bf16.msra.mxu0 0
      %259 = vmatprep.subr.bf16.mxu0 0
      %260 = vmatpush1.bf16.msra.mxu0 0
      %261 = vmatprep.subr.bf16.mxu0 0
      %262 = vmatpush1.bf16.msra.mxu0 0
      %263 = vmatprep.subr.bf16.mxu0 0
      %264 = vmatpush1.bf16.msra.mxu0 0
      %265 = vmatprep.subr.bf16.mxu0 0
      %266 = vmatpush1.bf16.msra.mxu0 0
      %267 = vmatprep.subr.bf16.mxu0 0
      %268 = vmatpush1.bf16.msra.mxu0 0
      %269 = vmatprep.subr.bf16.mxu0 0
      %270 = vmatpush1.bf16.msra.mxu0 0
      %271 = vmatprep.subr.bf16.mxu0 0
      %272 = vmatpush1.bf16.msra.mxu0 0
      %273 = vmatprep.subr.bf16.mxu0 0
      %274 = vmatpush1.bf16.msra.mxu0 0
      %275 = vmatprep.subr.bf16.mxu0 0
      %276 = vmatpush1.bf16.msra.mxu0 0
      %277 = vmatprep.subr.bf16.mxu0 0
      %278 = vmatpush1.bf16.msra.mxu0 0
      %279 = vmatprep.subr.bf16.mxu0 0
      %280 = vmatpush1.bf16.msra.mxu0 0
      %281 = vmatprep.subr.bf16.mxu0 0
      %282 = vmatpush1.bf16.msra.mxu0 0
      %283 = vmatprep.mubr.bf16.mxu0 0
      %284 = vmatmul.mubr.bf16.gmra.mrb[0].mxu0 %v249
      %v285 = vpop.f32.mrb[0].mxu0
      %v286 = vadd.f32 %v237, %v285
      %v287 = vpop.f32.mrb[0].mxu0
      %v288 = vpop.f32.mrb[0].mxu0
      %v289 = vpop.f32.mrb[0].mxu0
      %290 = vdwg.mxu0
      %v291 = vld [vmem:[%s8] sm:$0x1]
      %v293 = vlaneseq
      %v294 = vshrl.u32 %v293, 7
      %v295 = vsub.s32 0, %v294
      %v296 = vrot.slane %v291, %v295
      %v298 = vadd.f32 %v286, %v296
      %v299 = vmax.f32 %v298, 0.0
      %v300 = vpack.c.bf16 %v299, %v299
      %v301 = vld [vmem:[%s9] sm:$0xf]
      %v302 = vld [vmem:[%s9 + $0x4] sm:$0xf]
      %v303 = vld [vmem:[%s9 + $0x8] sm:$0xf]
      %v304 = vld [vmem:[%s9 + $0xc] sm:$0xf]
      %v305 = vld [vmem:[%s10] sm:$0x1]
      %v307 = vlaneseq
      %v308 = vshrl.u32 %v307, 7
      %v309 = vsub.s32 0, %v308
      %v310 = vrot.slane %v305, %v309
      %v316 = vunpack.c.l.b16 %v301
      %v317 = vunpack.c.l.b16 %v302
      %v318 = vunpack.c.l.b16 %v303
      %v319 = vunpack.c.l.b16 %v304
      %v320 = vpack.c.b16 %v317, %v316
      %v321 = vpack.c.b16 %v319, %v318
      %v325 = vsel %vm98, %v300, 0
      %327 = vmatprep.subr.bf16.mxu0 0
      %328 = vmatpush1.bf16.msra.mxu0 %v320
      %329 = vmatprep.subr.bf16.mxu0 0
      %330 = vmatpush1.bf16.msra.mxu0 %v321
      %331 = vmatprep.subr.bf16.mxu0 0
      %332 = vmatpush1.bf16.msra.mxu0 0
      %333 = vmatprep.subr.bf16.mxu0 0
      %334 = vmatpush1.bf16.msra.mxu0 0
      %335 = vmatprep.subr.bf16.mxu0 0
      %336 = vmatpush1.bf16.msra.mxu0 0
      %337 = vmatprep.subr.bf16.mxu0 0
      %338 = vmatpush1.bf16.msra.mxu0 0
      %339 = vmatprep.subr.bf16.mxu0 0
      %340 = vmatpush1.bf16.msra.mxu0 0
      %341 = vmatprep.subr.bf16.mxu0 0
      %342 = vmatpush1.bf16.msra.mxu0 0
      %343 = vmatprep.subr.bf16.mxu0 0
      %344 = vmatpush1.bf16.msra.mxu0 0
      %345 = vmatprep.subr.bf16.mxu0 0
      %346 = vmatpush1.bf16.msra.mxu0 0
      %347 = vmatprep.subr.bf16.mxu0 0
      %348 = vmatpush1.bf16.msra.mxu0 0
      %349 = vmatprep.subr.bf16.mxu0 0
      %350 = vmatpush1.bf16.msra.mxu0 0
      %351 = vmatprep.subr.bf16.mxu0 0
      %352 = vmatpush1.bf16.msra.mxu0 0
      %353 = vmatprep.subr.bf16.mxu0 0
      %354 = vmatpush1.bf16.msra.mxu0 0
      %355 = vmatprep.subr.bf16.mxu0 0
      %356 = vmatpush1.bf16.msra.mxu0 0
      %357 = vmatprep.subr.bf16.mxu0 0
      %358 = vmatpush1.bf16.msra.mxu0 0
      %359 = vmatprep.mubr.bf16.mxu0 0
      %360 = vmatmul.mubr.bf16.gmra.mrb[0].mxu0 %v325
      %v361 = vpop.f32.mrb[0].mxu0
      %v362 = vadd.f32 %v310, %v361
      %v363 = vpop.f32.mrb[0].mxu0
      %v364 = vpop.f32.mrb[0].mxu0
      %v365 = vpop.f32.mrb[0].mxu0
      %366 = vdwg.mxu0
      %v367 = vmax.f32 %v362, 0.0
      %v368 = vld [vmem:[%s11] sm:$0xf]
      %v369 = vld [vmem:[%s11 + $0x4] sm:$0xf]
      %v370 = vld [vmem:[%s11 + $0x8] sm:$0xf]
      %v371 = vld [vmem:[%s11 + $0xc] sm:$0xf]
      %v372 = vld [vmem:[%s12] sm:$0x1]
      %v374 = vlaneseq
      %v375 = vshrl.u32 %v374, 7
      %v376 = vsub.s32 0, %v375
      %v377 = vrot.slane %v372, %v376
      %380 = vrot.lane.b32.xlu0 %v300, 96
      %v381 = vpop.permute.xlu0 %380
      %v386 = vunpack.c.l.b16 %v368
      %v387 = vunpack.c.l.b16 %v369
      %v388 = vunpack.c.l.b16 %v370
      %v389 = vunpack.c.l.b16 %v371
      %v390 = vpack.c.b16 %v387, %v386
      %v391 = vpack.c.b16 %v389, %v388
      %v395 = vsel %vm98, %v381, 0
      %397 = vmatprep.subr.bf16.mxu0 0
      %398 = vmatpush1.bf16.msra.mxu0 %v390
      %399 = vmatprep.subr.bf16.mxu0 0
      %400 = vmatpush1.bf16.msra.mxu0 %v391
      %401 = vmatprep.subr.bf16.mxu0 0
      %402 = vmatpush1.bf16.msra.mxu0 0
      %403 = vmatprep.subr.bf16.mxu0 0
      %404 = vmatpush1.bf16.msra.mxu0 0
      %405 = vmatprep.subr.bf16.mxu0 0
      %406 = vmatpush1.bf16.msra.mxu0 0
      %407 = vmatprep.subr.bf16.mxu0 0
      %408 = vmatpush1.bf16.msra.mxu0 0
      %409 = vmatprep.subr.bf16.mxu0 0
      %410 = vmatpush1.bf16.msra.mxu0 0
      %411 = vmatprep.subr.bf16.mxu0 0
      %412 = vmatpush1.bf16.msra.mxu0 0
      %413 = vmatprep.subr.bf16.mxu0 0
      %414 = vmatpush1.bf16.msra.mxu0 0
      %415 = vmatprep.subr.bf16.mxu0 0
      %416 = vmatpush1.bf16.msra.mxu0 0
      %417 = vmatprep.subr.bf16.mxu0 0
      %418 = vmatpush1.bf16.msra.mxu0 0
      %419 = vmatprep.subr.bf16.mxu0 0
      %420 = vmatpush1.bf16.msra.mxu0 0
      %421 = vmatprep.subr.bf16.mxu0 0
      %422 = vmatpush1.bf16.msra.mxu0 0
      %423 = vmatprep.subr.bf16.mxu0 0
      %424 = vmatpush1.bf16.msra.mxu0 0
      %425 = vmatprep.subr.bf16.mxu0 0
      %426 = vmatpush1.bf16.msra.mxu0 0
      %427 = vmatprep.subr.bf16.mxu0 0
      %428 = vmatpush1.bf16.msra.mxu0 0
      %429 = vmatprep.mubr.bf16.mxu0 0
      %430 = vmatmul.mubr.bf16.gmra.mrb[0].mxu0 %v395
      %v431 = vpop.f32.mrb[0].mxu0
      %v432 = vadd.f32 %v377, %v431
      %v433 = vpop.f32.mrb[0].mxu0
      %v434 = vpop.f32.mrb[0].mxu0
      %v435 = vpop.f32.mrb[0].mxu0
      %436 = vdwg.mxu0
      %v437 = vmax.f32 %v432, 0.0
      %v438 = vld [vmem:[%s13] sm:$0x1]
      %v440 = vlaneseq
      %v441 = vshrl.u32 %v440, 7
      %v442 = vsub.s32 0, %v441
      %v443 = vrot.slane %v438, %v442
      %v445 = vmul.f32 %v367, %v443
      %v446 = vsel %vm98, %v445, 0.0
      %447 = vadd.xlane.f32.xlu0 %v446
      %v448 = vpop.xlane.xlu0 %447
      %v449 = vld [vmem:[#allocation3] sm:$0x1]
      %v451 = vlaneseq
      %v452 = vshrl.u32 %v451, 7
      %v453 = vsub.s32 0, %v452
      %v454 = vrot.slane %v449, %v453
      %v456 = vadd.f32 %v448, %v454
      %vm457 = vcmask 7168
      %458 = vst.msk [vmem:[%s17] sm:$0xff] %vm457, %v456
      %v459 = vld [vmem:[%s15] sm:$0x1]
      %v461 = vlaneseq
      %v462 = vshrl.u32 %v461, 7
      %v463 = vsub.s32 0, %v462
      %v464 = vrot.slane %v459, %v463
      %v466 = vmul.f32 %v437, %v464
      %v467 = vsel %vm98, %v466, 0.0
      %468 = vadd.xlane.f32.xlu0 %v467
      %v469 = vpop.xlane.xlu0 %468
      %v470 = vld [vmem:[#allocation4] sm:$0x1]
      %v472 = vlaneseq
      %v473 = vshrl.u32 %v472, 7
      %v474 = vsub.s32 0, %v473
      %v475 = vrot.slane %v470, %v474
      %v477 = vadd.f32 %v469, %v475
      %479 = vrot.lane.b32.xlu0 %v477, 1
      %v480 = vpop.permute.xlu0 %479
      %vm482 = vcmask 15368
      %483 = vst.msk [vmem:[%s17] sm:$0xff] %vm482, %v480
    $region81: #{tpu_custom_call.1} parent=1 // pred_fallthru
      _
    // Predicated region
    $region82: #{tpu_custom_call.1} parent=1 // pred_check
      _
    $region83: #{tpu_custom_call.1} parent=1 // pred_check_branch
      %485 = sbr.rel (0) target = $region85
    $region84: #{tpu_custom_call.1} parent=1 // pred_region
      _
    $region85: #{tpu_custom_call.1} parent=1 // pred_fallthru
      _
    // Predicated region
    $region86: #{tpu_custom_call.1} parent=1 // pred_check
      _
    $region87: #{tpu_custom_call.1} parent=1 // pred_check_branch
      %487 = sbr.rel (0) target = $region89
    $region88: #{tpu_custom_call.1} parent=1 // pred_region
      _
    $region89: #{tpu_custom_call.1} parent=1 // pred_fallthru
      _
    %488 = vsyncpa [#allocation6], 1

</llo_original>
